<compile_context>
chip_gen: v7x
topology: tpu7x:2x2x1
jax: 0.10.0
libtpu: 0.0.40
codegen_flags: <defaults>
</compile_context>

<pallas_src>
import functools

import jax
import jax.numpy as jnp
import numpy as np
from jax.experimental import pallas as pl
from jax.experimental.pallas import tpu as pltpu

NUM_HEADS = 4
IN_CHANNELS = 4
_E = IN_CHANNELS
_H = NUM_HEADS
_D = _E // _H

_CHUNK_ROWS = 8                  # sublanes per compute chunk (one full vreg)
_CHUNK = _CHUNK_ROWS * 128       # 1024 L positions per chunk

# ---- packed attention parameters (one flat f32 array placed in SMEM) -----------------
OFF_WQ = 0                       # (E, E) row-major: Wq[f, e]
OFF_WK = OFF_WQ + _E * _E
OFF_WV = OFF_WK + _E * _E
OFF_BQ = OFF_WV + _E * _E        # (E,)
OFF_BK = OFF_BQ + _E
OFF_BV = OFF_BK + _E
OFF_WO = OFF_BV + _E             # (E, E) row-major: Wo[f, c]
N_ATTN_PARAMS = OFF_WO + _E * _E


def _pack_attn_params(p):
    parts = [p["wq"], p["wk"], p["wv"], p["bq"], p["bk"], p["bv"], p["wo"]]
    return jnp.concatenate([jnp.asarray(a, jnp.float32).reshape(-1) for a in parts])


def _cdiv(a, b):
    return -(-a // b)


def _default_num_cores():
    """TensorCores one Pallas grid can use here (perf-only hint; 1 is always safe)."""
    try:
        kind = jax.devices()[0].device_kind.lower()
    except Exception:
        return 1
    return 2 if any(t in kind for t in ("v7", "tpu7", "v4", "v5p")) else 1


def _rnaseq_kernel(p_ref, x_ref, out_ref, *, batch, n_chunks, steps_per_core,
                   l_total, needs_mask):
    """One (core, L-tile) grid step.

    p_ref  : (N_ATTN_PARAMS,) f32 SMEM           -- attention weights, read as scalars
    x_ref  : (B*E, n_chunks, 8, 128) f32 VMEM    -- lane+sublane dense L layout
    out_ref: (1, E*B, 8, 128) f32 VMEM           -- per-core pooled-sum accumulator,
                                                    resident across the L (arbitrary) axis
    """
    B = batch
    E, H = IN_CHANNELS, NUM_HEADS
    D = E // H
    scale = 1.0 / float(D) ** 0.5

    core = pl.program_id(0)
    step = pl.program_id(1)

    @pl.when(step == 0)
    def _init():
        out_ref[...] = jnp.zeros_like(out_ref)

    # Hoist all scalar parameter reads out of the chunk loop (SMEM -> sregs once/step).
    W = [p_ref[i] for i in range(N_ATTN_PARAMS)]

    if needs_mask:
        pos = (jax.lax.broadcasted_iota(jnp.int32, (_CHUNK_ROWS, 128), 0) * 128
               + jax.lax.broadcasted_iota(jnp.int32, (_CHUNK_ROWS, 128), 1))
        tile_base = (core * steps_per_core + step) * (n_chunks * _CHUNK)

    def lin(xb, w_off, b_off, row):
        # PyTorch Linear row: out = sum_e W[row, e] * x[e] + b[row]
        acc = xb[0] * W[w_off + row * E]
        for e in range(1, E):
            acc = acc + xb[e] * W[w_off + row * E + e]
        return acc + W[b_off + row]

    def chunk_body(chunk, carry):
        # per-(batch, channel) slabs: (8, 128) -> one full vreg each, free leading index
        xs = [[x_ref[b * E + e, chunk, :, :] for e in range(E)] for b in range(B)]

        proj = [[None] * B for _ in range(E)]      # proj[f][b]: Wo @ concat(heads)

        for h in range(H):                         # heads / head-dims fully unrolled
            q = [[lin(xs[b], OFF_WQ, OFF_BQ, h * D + d) for d in range(D)]
                 for b in range(B)]
            if scale != 1.0:
                q = [[qd * scale for qd in qb] for qb in q]
            k = [[lin(xs[b], OFF_WK, OFF_BK, h * D + d) for d in range(D)]
                 for b in range(B)]
            v = [[lin(xs[b], OFF_WV, OFF_BV, h * D + d) for d in range(D)]
                 for b in range(B)]

            for i in range(B):
                # explicit per-j score slabs: no (B, B, L) intermediate, no axis reduces
                s = []
                for j in range(B):
                    sij = q[i][0] * k[j][0]
                    for d in range(1, D):
                        sij = sij + q[i][d] * k[j][d]
                    s.append(sij)
                m = s[0]
                for j in range(1, B):
                    m = jnp.maximum(m, s[j])
                ex = [jnp.exp(s[j] - m) for j in range(B)]
                denom = ex[0]
                for j in range(1, B):
                    denom = denom + ex[j]
                inv = pl.reciprocal(denom, approx=True)     # EUP vrcp (idle slot)
                inv = inv * (2.0 - denom * inv)             # one Newton step -> f32 acc.
                attn = [e_j * inv for e_j in ex]

                for d in range(D):
                    oh = attn[0] * v[0][d]
                    for j in range(1, B):
                        oh = oh + attn[j] * v[j][d]
                    c = h * D + d
                    for f in range(E):              # fold output-projection column c
                        t = oh * W[OFF_WO + f * E + c]
                        proj[f][i] = t if proj[f][i] is None else proj[f][i] + t

        if needs_mask:
            base = tile_base + chunk * _CHUNK
            lane_ok = (pos + base < l_total).astype(jnp.float32)

        # accumulate pooled sums into the resident output block (8 vregs RMW per chunk)
        for f in range(E):
            for b in range(B):
                contrib = proj[f][b]
                if needs_mask:
                    contrib = contrib * lane_ok
                idx = f * B + b
                out_ref[0, idx, :, :] = out_ref[0, idx, :, :] + contrib
        return carry

    jax.lax.fori_loop(0, n_chunks, chunk_body, 0)


def rnaseq_classifier(x, params, *, max_l_tile=16384, num_cores=None):
    """x: (B, C, L) float32, exactly as the PyTorch module receives it."""
    B, C, L = x.shape
    assert C == IN_CHANNELS and C % NUM_HEADS == 0
    x = x.astype(jnp.float32)

    if num_cores is None:
        num_cores = _default_num_cores()

    # L-tile per grid step: multiple of the 1024-element compute chunk, capped by the
    # user limit, a VMEM guard (double-buffered x block <= ~8 MiB), and a core's share.
    vmem_cap = max(_CHUNK, (8 * 1024 * 1024) // (2 * B * C * 4))
    tl = max(_CHUNK, (min(max_l_tile, vmem_cap) // _CHUNK) * _CHUNK)
    per_core = _cdiv(_cdiv(L, num_cores), _CHUNK) * _CHUNK
    tl = min(tl, per_core)
    steps = _cdiv(L, num_cores * tl)
    l_padded = num_cores * steps * tl
    n_chunks = tl // _CHUNK

    if l_padded != L:
        x = jnp.pad(x, ((0, 0), (0, 0), (0, l_padded - L)))
    # zero-cost contiguous reshape: lane- and sublane-dense working layout
    x4 = x.reshape(B * C, l_padded // _CHUNK, _CHUNK_ROWS, 128)

    p_flat = _pack_attn_params(params)                      # (76,) f32 -> SMEM

    kernel = functools.partial(
        _rnaseq_kernel, batch=B, n_chunks=n_chunks, steps_per_core=steps,
        l_total=L, needs_mask=(l_padded != L))

    partials = pl.pallas_call(
        kernel,
        out_shape=jax.ShapeDtypeStruct((num_cores, C * B, _CHUNK_ROWS, 128),
                                       jnp.float32),
        grid=(num_cores, steps),
        in_specs=[
            pl.BlockSpec(memory_space=pltpu.MemorySpace.SMEM),       # packed scalars
            pl.BlockSpec((B * C, n_chunks, _CHUNK_ROWS, 128),
                         lambda c, l: (0, c * steps + l, 0, 0)),     # stream x over L
        ],
        out_specs=pl.BlockSpec((1, C * B, _CHUNK_ROWS, 128),
                               lambda c, l: (c, 0, 0, 0)),           # per-core partials
        compiler_params=pltpu.CompilerParams(
            dimension_semantics=("parallel", "arbitrary")),
    )(p_flat, x4)

    # Finalize in XLA (trivially cheap): cross-lane reduce, mean over true L, FC stack.
    pooled = (jnp.sum(partials, axis=(0, 2, 3)).reshape(C, B).T / float(L)
              + jnp.asarray(params["bo"], jnp.float32))              # (B, E)
    h = pooled @ jnp.asarray(params["w1"], jnp.float32).T + params["b1"]
    h = jnp.where(h >= 0.0, h, params["a1"] * h)                     # PReLU (shared alpha)
    # TODO(synk): nn.Dropout is identity in eval mode; no stochastic masking implemented.
    return h @ jnp.asarray(params["w2"], jnp.float32).T + params["b2"]   # (B, 1)


def init_params(key):
    E = IN_CHANNELS
    ks = jax.random.split(key, 10)

    def w(k, shape, s=0.3):
        return jax.random.uniform(k, shape, jnp.float32, -1.0, 1.0) * s

    return dict(
        # nn.MultiheadAttention: in_proj_weight split into Wq/Wk/Wv, each (E, E)
        wq=w(ks[0], (E, E)), wk=w(ks[1], (E, E)), wv=w(ks[2], (E, E)),
        bq=w(ks[3], (E,), 0.1), bk=w(ks[4], (E,), 0.1), bv=w(ks[5], (E,), 0.1),
        wo=w(ks[6], (E, E)), bo=jnp.zeros((E,), jnp.float32),
        # fc stack for in_channels=4: Linear(4,2), PReLU(0.25), Dropout, Linear(2,1)
        w1=w(ks[7], (2, E)), b1=w(ks[8], (2,), 0.1),
        a1=jnp.full((1,), 0.25, jnp.float32),
        w2=w(ks[9], (1, 2)), b2=jnp.zeros((1,), jnp.float32),
    )


def reference(x, p, num_heads=NUM_HEADS):
    """Pure-JAX re-implementation of the PyTorch forward (eval mode) for checking."""
    B, C, L = x.shape
    E = C
    d = E // num_heads
    xt = jnp.transpose(x, (0, 2, 1))                 # (B, L, C): seq=B, batch=L, embed=C
    q = (xt @ p["wq"].T + p["bq"]) * (1.0 / float(d) ** 0.5)
    k = xt @ p["wk"].T + p["bk"]
    v = xt @ p["wv"].T + p["bv"]
    outs = []
    for h in range(num_heads):
        qh = q[..., h * d:(h + 1) * d]               # (B, L, d)
        kh = k[..., h * d:(h + 1) * d]
        vh = v[..., h * d:(h + 1) * d]
        scores = jnp.einsum("ind,jnd->nij", qh, kh)  # (L, B, B)
        attn = jax.nn.softmax(scores, axis=-1)
        outs.append(jnp.einsum("nij,jnd->ind", attn, vh))        # (B, L, d)
    ao = jnp.concatenate(outs, axis=-1)              # (B, L, E)
    proj = ao @ p["wo"].T + p["bo"]                  # (B, L, E)
    pooled = jnp.mean(proj, axis=1)                  # (B, E)
    h1 = pooled @ p["w1"].T + p["b1"]
    h1 = jnp.where(h1 >= 0, h1, p["a1"][0] * h1)
    return h1 @ p["w2"].T + p["b2"]                  # (B, 1)


if __name__ == "__main__":
    key = jax.random.PRNGKey(0)
    kx1, kx2, kp = jax.random.split(key, 3)

    B, C = 2, 4
    params = init_params(kp)

    # Case 1: L a multiple of the 1024-element chunk.  max_l_tile=2048 forces a real
    # multi-step grid (init -> accumulate -> writeback) and a multi-trip chunk loop.
    L1 = 4096
    x1 = jax.random.normal(kx1, (B, C, L1), jnp.float32)
    out1 = jax.block_until_ready(rnaseq_classifier(x1, params, max_l_tile=2048))
    assert out1.shape == (B, 1), out1.shape
    ref1 = reference(x1, params)
    np.testing.assert_allclose(np.asarray(out1), np.asarray(ref1),
                               rtol=1e-3, atol=1e-4)

    # Case 2: ragged L (not a multiple of 128) exercises the pad + lane-mask path.
    L2 = 3333
    x2 = jax.random.normal(kx2, (B, C, L2), jnp.float32)
    out2 = jax.block_until_ready(rnaseq_classifier(x2, params, max_l_tile=2048))
    assert out2.shape == (B, 1), out2.shape
    ref2 = reference(x2, params)
    np.testing.assert_allclose(np.asarray(out2), np.asarray(ref2),
                               rtol=1e-3, atol=1e-4)

    print("KERNEL_OK")
</pallas_src>

<mosaic_0001>
module attributes {stable_mosaic.version = 11 : i64} {
  func.func @_rnaseq_kernel(%arg0: i32, %arg1: i32, %arg2: memref<76xf32, #tpu.memory_space<smem>>, %arg3: memref<8x2x8x128xf32, #tpu.memory_space<vmem>>, %arg4: memref<1x8x8x128xf32, #tpu.memory_space<vmem>>) attributes {dimension_semantics = [#tpu.dimension_semantics<parallel>, #tpu.dimension_semantics<arbitrary>], iteration_bounds = array<i64: 1, 2>, scalar_prefetch = 0 : i64, scratch_operands = 0 : i64, tpu.core_type = #tpu.core_type<tc>, window_params = [{transform_indices = @transform_0, window_bounds = array<i64: 76>}, {transform_indices = @transform_1, window_bounds = array<i64: 8, 2, 8, 128>}, {transform_indices = @transform_2, window_bounds = array<i64: 1, 8, 8, 128>}]} {
    %c0_i32 = arith.constant 0 : i32
    %0 = arith.cmpi eq, %arg1, %c0_i32 : i32
    %1 = arith.extui %0 : i1 to i32
    %c0_i32_0 = arith.constant 0 : i32
    %2 = arith.cmpi ne, %1, %c0_i32_0 : i32
    scf.if %2 {
      %cst = arith.constant 0.000000e+00 : f32
      %80 = vector.broadcast %cst : f32 to vector<1x8x8x128xf32>
      %c0_3 = arith.constant 0 : index
      %c0_4 = arith.constant 0 : index
      %c0_5 = arith.constant 0 : index
      %c0_6 = arith.constant 0 : index
      %81 = vector.load %arg4[%c0_3, %c0_4, %c0_5, %c0_6] : memref<1x8x8x128xf32, #tpu.memory_space<vmem>>, vector<1x8x8x128xf32>
      tpu.vector_store %arg4[%c0_3, %c0_4, %c0_5, %c0_6], %80 {strides = array<i32>} : memref<1x8x8x128xf32, #tpu.memory_space<vmem>>, vector<1x8x8x128xf32>,
    } else {
    }
    %c0 = arith.constant 0 : index
    %3 = memref.load %arg2[%c0] : memref<76xf32, #tpu.memory_space<smem>>
    %c1 = arith.constant 1 : index
    %4 = memref.load %arg2[%c1] : memref<76xf32, #tpu.memory_space<smem>>
    %c2 = arith.constant 2 : index
    %5 = memref.load %arg2[%c2] : memref<76xf32, #tpu.memory_space<smem>>
    %c3 = arith.constant 3 : index
    %6 = memref.load %arg2[%c3] : memref<76xf32, #tpu.memory_space<smem>>
    %c4 = arith.constant 4 : index
    %7 = memref.load %arg2[%c4] : memref<76xf32, #tpu.memory_space<smem>>
    %c5 = arith.constant 5 : index
    %8 = memref.load %arg2[%c5] : memref<76xf32, #tpu.memory_space<smem>>
    %c6 = arith.constant 6 : index
    %9 = memref.load %arg2[%c6] : memref<76xf32, #tpu.memory_space<smem>>
    %c7 = arith.constant 7 : index
    %10 = memref.load %arg2[%c7] : memref<76xf32, #tpu.memory_space<smem>>
    %c8 = arith.constant 8 : index
    %11 = memref.load %arg2[%c8] : memref<76xf32, #tpu.memory_space<smem>>
    %c9 = arith.constant 9 : index
    %12 = memref.load %arg2[%c9] : memref<76xf32, #tpu.memory_space<smem>>
    %c10 = arith.constant 10 : index
    %13 = memref.load %arg2[%c10] : memref<76xf32, #tpu.memory_space<smem>>
    %c11 = arith.constant 11 : index
    %14 = memref.load %arg2[%c11] : memref<76xf32, #tpu.memory_space<smem>>
    %c12 = arith.constant 12 : index
    %15 = memref.load %arg2[%c12] : memref<76xf32, #tpu.memory_space<smem>>
    %c13 = arith.constant 13 : index
    %16 = memref.load %arg2[%c13] : memref<76xf32, #tpu.memory_space<smem>>
    %c14 = arith.constant 14 : index
    %17 = memref.load %arg2[%c14] : memref<76xf32, #tpu.memory_space<smem>>
    %c15 = arith.constant 15 : index
    %18 = memref.load %arg2[%c15] : memref<76xf32, #tpu.memory_space<smem>>
    %c16 = arith.constant 16 : index
    %19 = memref.load %arg2[%c16] : memref<76xf32, #tpu.memory_space<smem>>
    %c17 = arith.constant 17 : index
    %20 = memref.load %arg2[%c17] : memref<76xf32, #tpu.memory_space<smem>>
    %c18 = arith.constant 18 : index
    %21 = memref.load %arg2[%c18] : memref<76xf32, #tpu.memory_space<smem>>
    %c19 = arith.constant 19 : index
    %22 = memref.load %arg2[%c19] : memref<76xf32, #tpu.memory_space<smem>>
    %c20 = arith.constant 20 : index
    %23 = memref.load %arg2[%c20] : memref<76xf32, #tpu.memory_space<smem>>
    %c21 = arith.constant 21 : index
    %24 = memref.load %arg2[%c21] : memref<76xf32, #tpu.memory_space<smem>>
    %c22 = arith.constant 22 : index
    %25 = memref.load %arg2[%c22] : memref<76xf32, #tpu.memory_space<smem>>
    %c23 = arith.constant 23 : index
    %26 = memref.load %arg2[%c23] : memref<76xf32, #tpu.memory_space<smem>>
    %c24 = arith.constant 24 : index
    %27 = memref.load %arg2[%c24] : memref<76xf32, #tpu.memory_space<smem>>
    %c25 = arith.constant 25 : index
    %28 = memref.load %arg2[%c25] : memref<76xf32, #tpu.memory_space<smem>>
    %c26 = arith.constant 26 : index
    %29 = memref.load %arg2[%c26] : memref<76xf32, #tpu.memory_space<smem>>
    %c27 = arith.constant 27 : index
    %30 = memref.load %arg2[%c27] : memref<76xf32, #tpu.memory_space<smem>>
    %c28 = arith.constant 28 : index
    %31 = memref.load %arg2[%c28] : memref<76xf32, #tpu.memory_space<smem>>
    %c29 = arith.constant 29 : index
    %32 = memref.load %arg2[%c29] : memref<76xf32, #tpu.memory_space<smem>>
    %c30 = arith.constant 30 : index
    %33 = memref.load %arg2[%c30] : memref<76xf32, #tpu.memory_space<smem>>
    %c31 = arith.constant 31 : index
    %34 = memref.load %arg2[%c31] : memref<76xf32, #tpu.memory_space<smem>>
    %c32 = arith.constant 32 : index
    %35 = memref.load %arg2[%c32] : memref<76xf32, #tpu.memory_space<smem>>
    %c33 = arith.constant 33 : index
    %36 = memref.load %arg2[%c33] : memref<76xf32, #tpu.memory_space<smem>>
    %c34 = arith.constant 34 : index
    %37 = memref.load %arg2[%c34] : memref<76xf32, #tpu.memory_space<smem>>
    %c35 = arith.constant 35 : index
    %38 = memref.load %arg2[%c35] : memref<76xf32, #tpu.memory_space<smem>>
    %c36 = arith.constant 36 : index
    %39 = memref.load %arg2[%c36] : memref<76xf32, #tpu.memory_space<smem>>
    %c37 = arith.constant 37 : index
    %40 = memref.load %arg2[%c37] : memref<76xf32, #tpu.memory_space<smem>>
    %c38 = arith.constant 38 : index
    %41 = memref.load %arg2[%c38] : memref<76xf32, #tpu.memory_space<smem>>
    %c39 = arith.constant 39 : index
    %42 = memref.load %arg2[%c39] : memref<76xf32, #tpu.memory_space<smem>>
    %c40 = arith.constant 40 : index
    %43 = memref.load %arg2[%c40] : memref<76xf32, #tpu.memory_space<smem>>
    %c41 = arith.constant 41 : index
    %44 = memref.load %arg2[%c41] : memref<76xf32, #tpu.memory_space<smem>>
    %c42 = arith.constant 42 : index
    %45 = memref.load %arg2[%c42] : memref<76xf32, #tpu.memory_space<smem>>
    %c43 = arith.constant 43 : index
    %46 = memref.load %arg2[%c43] : memref<76xf32, #tpu.memory_space<smem>>
    %c44 = arith.constant 44 : index
    %47 = memref.load %arg2[%c44] : memref<76xf32, #tpu.memory_space<smem>>
    %c45 = arith.constant 45 : index
    %48 = memref.load %arg2[%c45] : memref<76xf32, #tpu.memory_space<smem>>
    %c46 = arith.constant 46 : index
    %49 = memref.load %arg2[%c46] : memref<76xf32, #tpu.memory_space<smem>>
    %c47 = arith.constant 47 : index
    %50 = memref.load %arg2[%c47] : memref<76xf32, #tpu.memory_space<smem>>
    %c48 = arith.constant 48 : index
    %51 = memref.load %arg2[%c48] : memref<76xf32, #tpu.memory_space<smem>>
    %c49 = arith.constant 49 : index
    %52 = memref.load %arg2[%c49] : memref<76xf32, #tpu.memory_space<smem>>
    %c50 = arith.constant 50 : index
    %53 = memref.load %arg2[%c50] : memref<76xf32, #tpu.memory_space<smem>>
    %c51 = arith.constant 51 : index
    %54 = memref.load %arg2[%c51] : memref<76xf32, #tpu.memory_space<smem>>
    %c52 = arith.constant 52 : index
    %55 = memref.load %arg2[%c52] : memref<76xf32, #tpu.memory_space<smem>>
    %c53 = arith.constant 53 : index
    %56 = memref.load %arg2[%c53] : memref<76xf32, #tpu.memory_space<smem>>
    %c54 = arith.constant 54 : index
    %57 = memref.load %arg2[%c54] : memref<76xf32, #tpu.memory_space<smem>>
    %c55 = arith.constant 55 : index
    %58 = memref.load %arg2[%c55] : memref<76xf32, #tpu.memory_space<smem>>
    %c56 = arith.constant 56 : index
    %59 = memref.load %arg2[%c56] : memref<76xf32, #tpu.memory_space<smem>>
    %c57 = arith.constant 57 : index
    %60 = memref.load %arg2[%c57] : memref<76xf32, #tpu.memory_space<smem>>
    %c58 = arith.constant 58 : index
    %61 = memref.load %arg2[%c58] : memref<76xf32, #tpu.memory_space<smem>>
    %c59 = arith.constant 59 : index
    %62 = memref.load %arg2[%c59] : memref<76xf32, #tpu.memory_space<smem>>
    %c60 = arith.constant 60 : index
    %63 = memref.load %arg2[%c60] : memref<76xf32, #tpu.memory_space<smem>>
    %c61 = arith.constant 61 : index
    %64 = memref.load %arg2[%c61] : memref<76xf32, #tpu.memory_space<smem>>
    %c62 = arith.constant 62 : index
    %65 = memref.load %arg2[%c62] : memref<76xf32, #tpu.memory_space<smem>>
    %c63 = arith.constant 63 : index
    %66 = memref.load %arg2[%c63] : memref<76xf32, #tpu.memory_space<smem>>
    %c64 = arith.constant 64 : index
    %67 = memref.load %arg2[%c64] : memref<76xf32, #tpu.memory_space<smem>>
    %c65 = arith.constant 65 : index
    %68 = memref.load %arg2[%c65] : memref<76xf32, #tpu.memory_space<smem>>
    %c66 = arith.constant 66 : index
    %69 = memref.load %arg2[%c66] : memref<76xf32, #tpu.memory_space<smem>>
    %c67 = arith.constant 67 : index
    %70 = memref.load %arg2[%c67] : memref<76xf32, #tpu.memory_space<smem>>
    %c68 = arith.constant 68 : index
    %71 = memref.load %arg2[%c68] : memref<76xf32, #tpu.memory_space<smem>>
    %c69 = arith.constant 69 : index
    %72 = memref.load %arg2[%c69] : memref<76xf32, #tpu.memory_space<smem>>
    %c70 = arith.constant 70 : index
    %73 = memref.load %arg2[%c70] : memref<76xf32, #tpu.memory_space<smem>>
    %c71 = arith.constant 71 : index
    %74 = memref.load %arg2[%c71] : memref<76xf32, #tpu.memory_space<smem>>
    %c72 = arith.constant 72 : index
    %75 = memref.load %arg2[%c72] : memref<76xf32, #tpu.memory_space<smem>>
    %c73 = arith.constant 73 : index
    %76 = memref.load %arg2[%c73] : memref<76xf32, #tpu.memory_space<smem>>
    %c74 = arith.constant 74 : index
    %77 = memref.load %arg2[%c74] : memref<76xf32, #tpu.memory_space<smem>>
    %c75 = arith.constant 75 : index
    %78 = memref.load %arg2[%c75] : memref<76xf32, #tpu.memory_space<smem>>
    %c0_i32_1 = arith.constant 0 : i32
    %c2_i32 = arith.constant 2 : i32
    %79 = arith.addi %c0_i32_1, %c2_i32 : i32
    %c1_i32 = arith.constant 1 : i32
    scf.for %arg5 = %c0_i32_1 to %79 step %c1_i32  : i32 {
      %c0_3 = arith.constant 0 : index
      %80 = arith.index_cast %arg5 : i32 to index
      %c0_4 = arith.constant 0 : index
      %c0_5 = arith.constant 0 : index
      %81 = vector.load %arg3[%c0_3, %80, %c0_4, %c0_5] : memref<8x2x8x128xf32, #tpu.memory_space<vmem>>, vector<1x1x8x128xf32>
      %82 = vector.shape_cast %81 : vector<1x1x8x128xf32> to vector<8x128xf32>
      %c1_6 = arith.constant 1 : index
      %83 = arith.index_cast %arg5 : i32 to index
      %c0_7 = arith.constant 0 : index
      %c0_8 = arith.constant 0 : index
      %84 = vector.load %arg3[%c1_6, %83, %c0_7, %c0_8] : memref<8x2x8x128xf32, #tpu.memory_space<vmem>>, vector<1x1x8x128xf32>
      %85 = vector.shape_cast %84 : vector<1x1x8x128xf32> to vector<8x128xf32>
      %c2_9 = arith.constant 2 : index
      %86 = arith.index_cast %arg5 : i32 to index
      %c0_10 = arith.constant 0 : index
      %c0_11 = arith.constant 0 : index
      %87 = vector.load %arg3[%c2_9, %86, %c0_10, %c0_11] : memref<8x2x8x128xf32, #tpu.memory_space<vmem>>, vector<1x1x8x128xf32>
      %88 = vector.shape_cast %87 : vector<1x1x8x128xf32> to vector<8x128xf32>
      %c3_12 = arith.constant 3 : index
      %89 = arith.index_cast %arg5 : i32 to index
      %c0_13 = arith.constant 0 : index
      %c0_14 = arith.constant 0 : index
      %90 = vector.load %arg3[%c3_12, %89, %c0_13, %c0_14] : memref<8x2x8x128xf32, #tpu.memory_space<vmem>>, vector<1x1x8x128xf32>
      %91 = vector.shape_cast %90 : vector<1x1x8x128xf32> to vector<8x128xf32>
      %c4_15 = arith.constant 4 : index
      %92 = arith.index_cast %arg5 : i32 to index
      %c0_16 = arith.constant 0 : index
      %c0_17 = arith.constant 0 : index
      %93 = vector.load %arg3[%c4_15, %92, %c0_16, %c0_17] : memref<8x2x8x128xf32, #tpu.memory_space<vmem>>, vector<1x1x8x128xf32>
      %94 = vector.shape_cast %93 : vector<1x1x8x128xf32> to vector<8x128xf32>
      %c5_18 = arith.constant 5 : index
      %95 = arith.index_cast %arg5 : i32 to index
      %c0_19 = arith.constant 0 : index
      %c0_20 = arith.constant 0 : index
      %96 = vector.load %arg3[%c5_18, %95, %c0_19, %c0_20] : memref<8x2x8x128xf32, #tpu.memory_space<vmem>>, vector<1x1x8x128xf32>
      %97 = vector.shape_cast %96 : vector<1x1x8x128xf32> to vector<8x128xf32>
      %c6_21 = arith.constant 6 : index
      %98 = arith.index_cast %arg5 : i32 to index
      %c0_22 = arith.constant 0 : index
      %c0_23 = arith.constant 0 : index
      %99 = vector.load %arg3[%c6_21, %98, %c0_22, %c0_23] : memref<8x2x8x128xf32, #tpu.memory_space<vmem>>, vector<1x1x8x128xf32>
      %100 = vector.shape_cast %99 : vector<1x1x8x128xf32> to vector<8x128xf32>
      %c7_24 = arith.constant 7 : index
      %101 = arith.index_cast %arg5 : i32 to index
      %c0_25 = arith.constant 0 : index
      %c0_26 = arith.constant 0 : index
      %102 = vector.load %arg3[%c7_24, %101, %c0_25, %c0_26] : memref<8x2x8x128xf32, #tpu.memory_space<vmem>>, vector<1x1x8x128xf32>
      %103 = vector.shape_cast %102 : vector<1x1x8x128xf32> to vector<8x128xf32>
      %104 = vector.broadcast %3 : f32 to vector<8x128xf32>
      %105 = arith.mulf %82, %104 : vector<8x128xf32>
      %106 = vector.broadcast %4 : f32 to vector<8x128xf32>
      %107 = arith.mulf %85, %106 : vector<8x128xf32>
      %108 = arith.addf %105, %107 : vector<8x128xf32>
      %109 = vector.broadcast %5 : f32 to vector<8x128xf32>
      %110 = arith.mulf %88, %109 : vector<8x128xf32>
      %111 = arith.addf %108, %110 : vector<8x128xf32>
      %112 = vector.broadcast %6 : f32 to vector<8x128xf32>
      %113 = arith.mulf %91, %112 : vector<8x128xf32>
      %114 = arith.addf %111, %113 : vector<8x128xf32>
      %115 = vector.broadcast %51 : f32 to vector<8x128xf32>
      %116 = arith.addf %114, %115 : vector<8x128xf32>
      %117 = vector.broadcast %3 : f32 to vector<8x128xf32>
      %118 = arith.mulf %94, %117 : vector<8x128xf32>
      %119 = vector.broadcast %4 : f32 to vector<8x128xf32>
      %120 = arith.mulf %97, %119 : vector<8x128xf32>
      %121 = arith.addf %118, %120 : vector<8x128xf32>
      %122 = vector.broadcast %5 : f32 to vector<8x128xf32>
      %123 = arith.mulf %100, %122 : vector<8x128xf32>
      %124 = arith.addf %121, %123 : vector<8x128xf32>
      %125 = vector.broadcast %6 : f32 to vector<8x128xf32>
      %126 = arith.mulf %103, %125 : vector<8x128xf32>
      %127 = arith.addf %124, %126 : vector<8x128xf32>
      %128 = vector.broadcast %51 : f32 to vector<8x128xf32>
      %129 = arith.addf %127, %128 : vector<8x128xf32>
      %130 = vector.broadcast %19 : f32 to vector<8x128xf32>
      %131 = arith.mulf %82, %130 : vector<8x128xf32>
      %132 = vector.broadcast %20 : f32 to vector<8x128xf32>
      %133 = arith.mulf %85, %132 : vector<8x128xf32>
      %134 = arith.addf %131, %133 : vector<8x128xf32>
      %135 = vector.broadcast %21 : f32 to vector<8x128xf32>
      %136 = arith.mulf %88, %135 : vector<8x128xf32>
      %137 = arith.addf %134, %136 : vector<8x128xf32>
      %138 = vector.broadcast %22 : f32 to vector<8x128xf32>
      %139 = arith.mulf %91, %138 : vector<8x128xf32>
      %140 = arith.addf %137, %139 : vector<8x128xf32>
      %141 = vector.broadcast %55 : f32 to vector<8x128xf32>
      %142 = arith.addf %140, %141 : vector<8x128xf32>
      %143 = vector.broadcast %19 : f32 to vector<8x128xf32>
      %144 = arith.mulf %94, %143 : vector<8x128xf32>
      %145 = vector.broadcast %20 : f32 to vector<8x128xf32>
      %146 = arith.mulf %97, %145 : vector<8x128xf32>
      %147 = arith.addf %144, %146 : vector<8x128xf32>
      %148 = vector.broadcast %21 : f32 to vector<8x128xf32>
      %149 = arith.mulf %100, %148 : vector<8x128xf32>
      %150 = arith.addf %147, %149 : vector<8x128xf32>
      %151 = vector.broadcast %22 : f32 to vector<8x128xf32>
      %152 = arith.mulf %103, %151 : vector<8x128xf32>
      %153 = arith.addf %150, %152 : vector<8x128xf32>
      %154 = vector.broadcast %55 : f32 to vector<8x128xf32>
      %155 = arith.addf %153, %154 : vector<8x128xf32>
      %156 = vector.broadcast %35 : f32 to vector<8x128xf32>
      %157 = arith.mulf %82, %156 : vector<8x128xf32>
      %158 = vector.broadcast %36 : f32 to vector<8x128xf32>
      %159 = arith.mulf %85, %158 : vector<8x128xf32>
      %160 = arith.addf %157, %159 : vector<8x128xf32>
      %161 = vector.broadcast %37 : f32 to vector<8x128xf32>
      %162 = arith.mulf %88, %161 : vector<8x128xf32>
      %163 = arith.addf %160, %162 : vector<8x128xf32>
      %164 = vector.broadcast %38 : f32 to vector<8x128xf32>
      %165 = arith.mulf %91, %164 : vector<8x128xf32>
      %166 = arith.addf %163, %165 : vector<8x128xf32>
      %167 = vector.broadcast %59 : f32 to vector<8x128xf32>
      %168 = arith.addf %166, %167 : vector<8x128xf32>
      %169 = vector.broadcast %35 : f32 to vector<8x128xf32>
      %170 = arith.mulf %94, %169 : vector<8x128xf32>
      %171 = vector.broadcast %36 : f32 to vector<8x128xf32>
      %172 = arith.mulf %97, %171 : vector<8x128xf32>
      %173 = arith.addf %170, %172 : vector<8x128xf32>
      %174 = vector.broadcast %37 : f32 to vector<8x128xf32>
      %175 = arith.mulf %100, %174 : vector<8x128xf32>
      %176 = arith.addf %173, %175 : vector<8x128xf32>
      %177 = vector.broadcast %38 : f32 to vector<8x128xf32>
      %178 = arith.mulf %103, %177 : vector<8x128xf32>
      %179 = arith.addf %176, %178 : vector<8x128xf32>
      %180 = vector.broadcast %59 : f32 to vector<8x128xf32>
      %181 = arith.addf %179, %180 : vector<8x128xf32>
      %182 = arith.mulf %116, %142 : vector<8x128xf32>
      %183 = arith.mulf %116, %155 : vector<8x128xf32>
      %184 = arith.maximumf %182, %183 : vector<8x128xf32>
      %185 = arith.subf %182, %184 : vector<8x128xf32>
      %186 = math.exp %185 : vector<8x128xf32>
      %187 = arith.subf %183, %184 : vector<8x128xf32>
      %188 = math.exp %187 : vector<8x128xf32>
      %189 = arith.addf %186, %188 : vector<8x128xf32>
      %190 = tpu.reciprocal %189 {approx = true} : vector<8x128xf32> -> vector<8x128xf32>
      %191 = arith.mulf %189, %190 : vector<8x128xf32>
      %cst = arith.constant 2.000000e+00 : f32
      %192 = vector.broadcast %cst : f32 to vector<8x128xf32>
      %193 = arith.subf %192, %191 : vector<8x128xf32>
      %194 = arith.mulf %190, %193 : vector<8x128xf32>
      %195 = arith.mulf %186, %194 : vector<8x128xf32>
      %196 = arith.mulf %188, %194 : vector<8x128xf32>
      %197 = arith.mulf %195, %168 : vector<8x128xf32>
      %198 = arith.mulf %196, %181 : vector<8x128xf32>
      %199 = arith.addf %197, %198 : vector<8x128xf32>
      %200 = vector.broadcast %63 : f32 to vector<8x128xf32>
      %201 = arith.mulf %199, %200 : vector<8x128xf32>
      %202 = vector.broadcast %67 : f32 to vector<8x128xf32>
      %203 = arith.mulf %199, %202 : vector<8x128xf32>
      %204 = vector.broadcast %71 : f32 to vector<8x128xf32>
      %205 = arith.mulf %199, %204 : vector<8x128xf32>
      %206 = vector.broadcast %75 : f32 to vector<8x128xf32>
      %207 = arith.mulf %199, %206 : vector<8x128xf32>
      %208 = arith.mulf %129, %142 : vector<8x128xf32>
      %209 = arith.mulf %129, %155 : vector<8x128xf32>
      %210 = arith.maximumf %208, %209 : vector<8x128xf32>
      %211 = arith.subf %208, %210 : vector<8x128xf32>
      %212 = math.exp %211 : vector<8x128xf32>
      %213 = arith.subf %209, %210 : vector<8x128xf32>
      %214 = math.exp %213 : vector<8x128xf32>
      %215 = arith.addf %212, %214 : vector<8x128xf32>
      %216 = tpu.reciprocal %215 {approx = true} : vector<8x128xf32> -> vector<8x128xf32>
      %217 = arith.mulf %215, %216 : vector<8x128xf32>
      %cst_27 = arith.constant 2.000000e+00 : f32
      %218 = vector.broadcast %cst_27 : f32 to vector<8x128xf32>
      %219 = arith.subf %218, %217 : vector<8x128xf32>
      %220 = arith.mulf %216, %219 : vector<8x128xf32>
      %221 = arith.mulf %212, %220 : vector<8x128xf32>
      %222 = arith.mulf %214, %220 : vector<8x128xf32>
      %223 = arith.mulf %221, %168 : vector<8x128xf32>
      %224 = arith.mulf %222, %181 : vector<8x128xf32>
      %225 = arith.addf %223, %224 : vector<8x128xf32>
      %226 = vector.broadcast %63 : f32 to vector<8x128xf32>
      %227 = arith.mulf %225, %226 : vector<8x128xf32>
      %228 = vector.broadcast %67 : f32 to vector<8x128xf32>
      %229 = arith.mulf %225, %228 : vector<8x128xf32>
      %230 = vector.broadcast %71 : f32 to vector<8x128xf32>
      %231 = arith.mulf %225, %230 : vector<8x128xf32>
      %232 = vector.broadcast %75 : f32 to vector<8x128xf32>
      %233 = arith.mulf %225, %232 : vector<8x128xf32>
      %234 = vector.broadcast %7 : f32 to vector<8x128xf32>
      %235 = arith.mulf %82, %234 : vector<8x128xf32>
      %236 = vector.broadcast %8 : f32 to vector<8x128xf32>
      %237 = arith.mulf %85, %236 : vector<8x128xf32>
      %238 = arith.addf %235, %237 : vector<8x128xf32>
      %239 = vector.broadcast %9 : f32 to vector<8x128xf32>
      %240 = arith.mulf %88, %239 : vector<8x128xf32>
      %241 = arith.addf %238, %240 : vector<8x128xf32>
      %242 = vector.broadcast %10 : f32 to vector<8x128xf32>
      %243 = arith.mulf %91, %242 : vector<8x128xf32>
      %244 = arith.addf %241, %243 : vector<8x128xf32>
      %245 = vector.broadcast %52 : f32 to vector<8x128xf32>
      %246 = arith.addf %244, %245 : vector<8x128xf32>
      %247 = vector.broadcast %7 : f32 to vector<8x128xf32>
      %248 = arith.mulf %94, %247 : vector<8x128xf32>
      %249 = vector.broadcast %8 : f32 to vector<8x128xf32>
      %250 = arith.mulf %97, %249 : vector<8x128xf32>
      %251 = arith.addf %248, %250 : vector<8x128xf32>
      %252 = vector.broadcast %9 : f32 to vector<8x128xf32>
      %253 = arith.mulf %100, %252 : vector<8x128xf32>
      %254 = arith.addf %251, %253 : vector<8x128xf32>
      %255 = vector.broadcast %10 : f32 to vector<8x128xf32>
      %256 = arith.mulf %103, %255 : vector<8x128xf32>
      %257 = arith.addf %254, %256 : vector<8x128xf32>
      %258 = vector.broadcast %52 : f32 to vector<8x128xf32>
      %259 = arith.addf %257, %258 : vector<8x128xf32>
      %260 = vector.broadcast %23 : f32 to vector<8x128xf32>
      %261 = arith.mulf %82, %260 : vector<8x128xf32>
      %262 = vector.broadcast %24 : f32 to vector<8x128xf32>
      %263 = arith.mulf %85, %262 : vector<8x128xf32>
      %264 = arith.addf %261, %263 : vector<8x128xf32>
      %265 = vector.broadcast %25 : f32 to vector<8x128xf32>
      %266 = arith.mulf %88, %265 : vector<8x128xf32>
      %267 = arith.addf %264, %266 : vector<8x128xf32>
      %268 = vector.broadcast %26 : f32 to vector<8x128xf32>
      %269 = arith.mulf %91, %268 : vector<8x128xf32>
      %270 = arith.addf %267, %269 : vector<8x128xf32>
      %271 = vector.broadcast %56 : f32 to vector<8x128xf32>
      %272 = arith.addf %270, %271 : vector<8x128xf32>
      %273 = vector.broadcast %23 : f32 to vector<8x128xf32>
      %274 = arith.mulf %94, %273 : vector<8x128xf32>
      %275 = vector.broadcast %24 : f32 to vector<8x128xf32>
      %276 = arith.mulf %97, %275 : vector<8x128xf32>
      %277 = arith.addf %274, %276 : vector<8x128xf32>
      %278 = vector.broadcast %25 : f32 to vector<8x128xf32>
      %279 = arith.mulf %100, %278 : vector<8x128xf32>
      %280 = arith.addf %277, %279 : vector<8x128xf32>
      %281 = vector.broadcast %26 : f32 to vector<8x128xf32>
      %282 = arith.mulf %103, %281 : vector<8x128xf32>
      %283 = arith.addf %280, %282 : vector<8x128xf32>
      %284 = vector.broadcast %56 : f32 to vector<8x128xf32>
      %285 = arith.addf %283, %284 : vector<8x128xf32>
      %286 = vector.broadcast %39 : f32 to vector<8x128xf32>
      %287 = arith.mulf %82, %286 : vector<8x128xf32>
      %288 = vector.broadcast %40 : f32 to vector<8x128xf32>
      %289 = arith.mulf %85, %288 : vector<8x128xf32>
      %290 = arith.addf %287, %289 : vector<8x128xf32>
      %291 = vector.broadcast %41 : f32 to vector<8x128xf32>
      %292 = arith.mulf %88, %291 : vector<8x128xf32>
      %293 = arith.addf %290, %292 : vector<8x128xf32>
      %294 = vector.broadcast %42 : f32 to vector<8x128xf32>
      %295 = arith.mulf %91, %294 : vector<8x128xf32>
      %296 = arith.addf %293, %295 : vector<8x128xf32>
      %297 = vector.broadcast %60 : f32 to vector<8x128xf32>
      %298 = arith.addf %296, %297 : vector<8x128xf32>
      %299 = vector.broadcast %39 : f32 to vector<8x128xf32>
      %300 = arith.mulf %94, %299 : vector<8x128xf32>
      %301 = vector.broadcast %40 : f32 to vector<8x128xf32>
      %302 = arith.mulf %97, %301 : vector<8x128xf32>
      %303 = arith.addf %300, %302 : vector<8x128xf32>
      %304 = vector.broadcast %41 : f32 to vector<8x128xf32>
      %305 = arith.mulf %100, %304 : vector<8x128xf32>
      %306 = arith.addf %303, %305 : vector<8x128xf32>
      %307 = vector.broadcast %42 : f32 to vector<8x128xf32>
      %308 = arith.mulf %103, %307 : vector<8x128xf32>
      %309 = arith.addf %306, %308 : vector<8x128xf32>
      %310 = vector.broadcast %60 : f32 to vector<8x128xf32>
      %311 = arith.addf %309, %310 : vector<8x128xf32>
      %312 = arith.mulf %246, %272 : vector<8x128xf32>
      %313 = arith.mulf %246, %285 : vector<8x128xf32>
      %314 = arith.maximumf %312, %313 : vector<8x128xf32>
      %315 = arith.subf %312, %314 : vector<8x128xf32>
      %316 = math.exp %315 : vector<8x128xf32>
      %317 = arith.subf %313, %314 : vector<8x128xf32>
      %318 = math.exp %317 : vector<8x128xf32>
      %319 = arith.addf %316, %318 : vector<8x128xf32>
      %320 = tpu.reciprocal %319 {approx = true} : vector<8x128xf32> -> vector<8x128xf32>
      %321 = arith.mulf %319, %320 : vector<8x128xf32>
      %cst_28 = arith.constant 2.000000e+00 : f32
      %322 = vector.broadcast %cst_28 : f32 to vector<8x128xf32>
      %323 = arith.subf %322, %321 : vector<8x128xf32>
      %324 = arith.mulf %320, %323 : vector<8x128xf32>
      %325 = arith.mulf %316, %324 : vector<8x128xf32>
      %326 = arith.mulf %318, %324 : vector<8x128xf32>
      %327 = arith.mulf %325, %298 : vector<8x128xf32>
      %328 = arith.mulf %326, %311 : vector<8x128xf32>
      %329 = arith.addf %327, %328 : vector<8x128xf32>
      %330 = vector.broadcast %64 : f32 to vector<8x128xf32>
      %331 = arith.mulf %329, %330 : vector<8x128xf32>
      %332 = arith.addf %201, %331 : vector<8x128xf32>
      %333 = vector.broadcast %68 : f32 to vector<8x128xf32>
      %334 = arith.mulf %329, %333 : vector<8x128xf32>
      %335 = arith.addf %203, %334 : vector<8x128xf32>
      %336 = vector.broadcast %72 : f32 to vector<8x128xf32>
      %337 = arith.mulf %329, %336 : vector<8x128xf32>
      %338 = arith.addf %205, %337 : vector<8x128xf32>
      %339 = vector.broadcast %76 : f32 to vector<8x128xf32>
      %340 = arith.mulf %329, %339 : vector<8x128xf32>
      %341 = arith.addf %207, %340 : vector<8x128xf32>
      %342 = arith.mulf %259, %272 : vector<8x128xf32>
      %343 = arith.mulf %259, %285 : vector<8x128xf32>
      %344 = arith.maximumf %342, %343 : vector<8x128xf32>
      %345 = arith.subf %342, %344 : vector<8x128xf32>
      %346 = math.exp %345 : vector<8x128xf32>
      %347 = arith.subf %343, %344 : vector<8x128xf32>
      %348 = math.exp %347 : vector<8x128xf32>
      %349 = arith.addf %346, %348 : vector<8x128xf32>
      %350 = tpu.reciprocal %349 {approx = true} : vector<8x128xf32> -> vector<8x128xf32>
      %351 = arith.mulf %349, %350 : vector<8x128xf32>
      %cst_29 = arith.constant 2.000000e+00 : f32
      %352 = vector.broadcast %cst_29 : f32 to vector<8x128xf32>
      %353 = arith.subf %352, %351 : vector<8x128xf32>
      %354 = arith.mulf %350, %353 : vector<8x128xf32>
      %355 = arith.mulf %346, %354 : vector<8x128xf32>
      %356 = arith.mulf %348, %354 : vector<8x128xf32>
      %357 = arith.mulf %355, %298 : vector<8x128xf32>
      %358 = arith.mulf %356, %311 : vector<8x128xf32>
      %359 = arith.addf %357, %358 : vector<8x128xf32>
      %360 = vector.broadcast %64 : f32 to vector<8x128xf32>
      %361 = arith.mulf %359, %360 : vector<8x128xf32>
      %362 = arith.addf %227, %361 : vector<8x128xf32>
      %363 = vector.broadcast %68 : f32 to vector<8x128xf32>
      %364 = arith.mulf %359, %363 : vector<8x128xf32>
      %365 = arith.addf %229, %364 : vector<8x128xf32>
      %366 = vector.broadcast %72 : f32 to vector<8x128xf32>
      %367 = arith.mulf %359, %366 : vector<8x128xf32>
      %368 = arith.addf %231, %367 : vector<8x128xf32>
      %369 = vector.broadcast %76 : f32 to vector<8x128xf32>
      %370 = arith.mulf %359, %369 : vector<8x128xf32>
      %371 = arith.addf %233, %370 : vector<8x128xf32>
      %372 = vector.broadcast %11 : f32 to vector<8x128xf32>
      %373 = arith.mulf %82, %372 : vector<8x128xf32>
      %374 = vector.broadcast %12 : f32 to vector<8x128xf32>
      %375 = arith.mulf %85, %374 : vector<8x128xf32>
      %376 = arith.addf %373, %375 : vector<8x128xf32>
      %377 = vector.broadcast %13 : f32 to vector<8x128xf32>
      %378 = arith.mulf %88, %377 : vector<8x128xf32>
      %379 = arith.addf %376, %378 : vector<8x128xf32>
      %380 = vector.broadcast %14 : f32 to vector<8x128xf32>
      %381 = arith.mulf %91, %380 : vector<8x128xf32>
      %382 = arith.addf %379, %381 : vector<8x128xf32>
      %383 = vector.broadcast %53 : f32 to vector<8x128xf32>
      %384 = arith.addf %382, %383 : vector<8x128xf32>
      %385 = vector.broadcast %11 : f32 to vector<8x128xf32>
      %386 = arith.mulf %94, %385 : vector<8x128xf32>
      %387 = vector.broadcast %12 : f32 to vector<8x128xf32>
      %388 = arith.mulf %97, %387 : vector<8x128xf32>
      %389 = arith.addf %386, %388 : vector<8x128xf32>
      %390 = vector.broadcast %13 : f32 to vector<8x128xf32>
      %391 = arith.mulf %100, %390 : vector<8x128xf32>
      %392 = arith.addf %389, %391 : vector<8x128xf32>
      %393 = vector.broadcast %14 : f32 to vector<8x128xf32>
      %394 = arith.mulf %103, %393 : vector<8x128xf32>
      %395 = arith.addf %392, %394 : vector<8x128xf32>
      %396 = vector.broadcast %53 : f32 to vector<8x128xf32>
      %397 = arith.addf %395, %396 : vector<8x128xf32>
      %398 = vector.broadcast %27 : f32 to vector<8x128xf32>
      %399 = arith.mulf %82, %398 : vector<8x128xf32>
      %400 = vector.broadcast %28 : f32 to vector<8x128xf32>
      %401 = arith.mulf %85, %400 : vector<8x128xf32>
      %402 = arith.addf %399, %401 : vector<8x128xf32>
      %403 = vector.broadcast %29 : f32 to vector<8x128xf32>
      %404 = arith.mulf %88, %403 : vector<8x128xf32>
      %405 = arith.addf %402, %404 : vector<8x128xf32>
      %406 = vector.broadcast %30 : f32 to vector<8x128xf32>
      %407 = arith.mulf %91, %406 : vector<8x128xf32>
      %408 = arith.addf %405, %407 : vector<8x128xf32>
      %409 = vector.broadcast %57 : f32 to vector<8x128xf32>
      %410 = arith.addf %408, %409 : vector<8x128xf32>
      %411 = vector.broadcast %27 : f32 to vector<8x128xf32>
      %412 = arith.mulf %94, %411 : vector<8x128xf32>
      %413 = vector.broadcast %28 : f32 to vector<8x128xf32>
      %414 = arith.mulf %97, %413 : vector<8x128xf32>
      %415 = arith.addf %412, %414 : vector<8x128xf32>
      %416 = vector.broadcast %29 : f32 to vector<8x128xf32>
      %417 = arith.mulf %100, %416 : vector<8x128xf32>
      %418 = arith.addf %415, %417 : vector<8x128xf32>
      %419 = vector.broadcast %30 : f32 to vector<8x128xf32>
      %420 = arith.mulf %103, %419 : vector<8x128xf32>
      %421 = arith.addf %418, %420 : vector<8x128xf32>
      %422 = vector.broadcast %57 : f32 to vector<8x128xf32>
      %423 = arith.addf %421, %422 : vector<8x128xf32>
      %424 = vector.broadcast %43 : f32 to vector<8x128xf32>
      %425 = arith.mulf %82, %424 : vector<8x128xf32>
      %426 = vector.broadcast %44 : f32 to vector<8x128xf32>
      %427 = arith.mulf %85, %426 : vector<8x128xf32>
      %428 = arith.addf %425, %427 : vector<8x128xf32>
      %429 = vector.broadcast %45 : f32 to vector<8x128xf32>
      %430 = arith.mulf %88, %429 : vector<8x128xf32>
      %431 = arith.addf %428, %430 : vector<8x128xf32>
      %432 = vector.broadcast %46 : f32 to vector<8x128xf32>
      %433 = arith.mulf %91, %432 : vector<8x128xf32>
      %434 = arith.addf %431, %433 : vector<8x128xf32>
      %435 = vector.broadcast %61 : f32 to vector<8x128xf32>
      %436 = arith.addf %434, %435 : vector<8x128xf32>
      %437 = vector.broadcast %43 : f32 to vector<8x128xf32>
      %438 = arith.mulf %94, %437 : vector<8x128xf32>
      %439 = vector.broadcast %44 : f32 to vector<8x128xf32>
      %440 = arith.mulf %97, %439 : vector<8x128xf32>
      %441 = arith.addf %438, %440 : vector<8x128xf32>
      %442 = vector.broadcast %45 : f32 to vector<8x128xf32>
      %443 = arith.mulf %100, %442 : vector<8x128xf32>
      %444 = arith.addf %441, %443 : vector<8x128xf32>
      %445 = vector.broadcast %46 : f32 to vector<8x128xf32>
      %446 = arith.mulf %103, %445 : vector<8x128xf32>
      %447 = arith.addf %444, %446 : vector<8x128xf32>
      %448 = vector.broadcast %61 : f32 to vector<8x128xf32>
      %449 = arith.addf %447, %448 : vector<8x128xf32>
      %450 = arith.mulf %384, %410 : vector<8x128xf32>
      %451 = arith.mulf %384, %423 : vector<8x128xf32>
      %452 = arith.maximumf %450, %451 : vector<8x128xf32>
      %453 = arith.subf %450, %452 : vector<8x128xf32>
      %454 = math.exp %453 : vector<8x128xf32>
      %455 = arith.subf %451, %452 : vector<8x128xf32>
      %456 = math.exp %455 : vector<8x128xf32>
      %457 = arith.addf %454, %456 : vector<8x128xf32>
      %458 = tpu.reciprocal %457 {approx = true} : vector<8x128xf32> -> vector<8x128xf32>
      %459 = arith.mulf %457, %458 : vector<8x128xf32>
      %cst_30 = arith.constant 2.000000e+00 : f32
      %460 = vector.broadcast %cst_30 : f32 to vector<8x128xf32>
      %461 = arith.subf %460, %459 : vector<8x128xf32>
      %462 = arith.mulf %458, %461 : vector<8x128xf32>
      %463 = arith.mulf %454, %462 : vector<8x128xf32>
      %464 = arith.mulf %456, %462 : vector<8x128xf32>
      %465 = arith.mulf %463, %436 : vector<8x128xf32>
      %466 = arith.mulf %464, %449 : vector<8x128xf32>
      %467 = arith.addf %465, %466 : vector<8x128xf32>
      %468 = vector.broadcast %65 : f32 to vector<8x128xf32>
      %469 = arith.mulf %467, %468 : vector<8x128xf32>
      %470 = arith.addf %332, %469 : vector<8x128xf32>
      %471 = vector.broadcast %69 : f32 to vector<8x128xf32>
      %472 = arith.mulf %467, %471 : vector<8x128xf32>
      %473 = arith.addf %335, %472 : vector<8x128xf32>
      %474 = vector.broadcast %73 : f32 to vector<8x128xf32>
      %475 = arith.mulf %467, %474 : vector<8x128xf32>
      %476 = arith.addf %338, %475 : vector<8x128xf32>
      %477 = vector.broadcast %77 : f32 to vector<8x128xf32>
      %478 = arith.mulf %467, %477 : vector<8x128xf32>
      %479 = arith.addf %341, %478 : vector<8x128xf32>
      %480 = arith.mulf %397, %410 : vector<8x128xf32>
      %481 = arith.mulf %397, %423 : vector<8x128xf32>
      %482 = arith.maximumf %480, %481 : vector<8x128xf32>
      %483 = arith.subf %480, %482 : vector<8x128xf32>
      %484 = math.exp %483 : vector<8x128xf32>
      %485 = arith.subf %481, %482 : vector<8x128xf32>
      %486 = math.exp %485 : vector<8x128xf32>
      %487 = arith.addf %484, %486 : vector<8x128xf32>
      %488 = tpu.reciprocal %487 {approx = true} : vector<8x128xf32> -> vector<8x128xf32>
      %489 = arith.mulf %487, %488 : vector<8x128xf32>
      %cst_31 = arith.constant 2.000000e+00 : f32
      %490 = vector.broadcast %cst_31 : f32 to vector<8x128xf32>
      %491 = arith.subf %490, %489 : vector<8x128xf32>
      %492 = arith.mulf %488, %491 : vector<8x128xf32>
      %493 = arith.mulf %484, %492 : vector<8x128xf32>
      %494 = arith.mulf %486, %492 : vector<8x128xf32>
      %495 = arith.mulf %493, %436 : vector<8x128xf32>
      %496 = arith.mulf %494, %449 : vector<8x128xf32>
      %497 = arith.addf %495, %496 : vector<8x128xf32>
      %498 = vector.broadcast %65 : f32 to vector<8x128xf32>
      %499 = arith.mulf %497, %498 : vector<8x128xf32>
      %500 = arith.addf %362, %499 : vector<8x128xf32>
      %501 = vector.broadcast %69 : f32 to vector<8x128xf32>
      %502 = arith.mulf %497, %501 : vector<8x128xf32>
      %503 = arith.addf %365, %502 : vector<8x128xf32>
      %504 = vector.broadcast %73 : f32 to vector<8x128xf32>
      %505 = arith.mulf %497, %504 : vector<8x128xf32>
      %506 = arith.addf %368, %505 : vector<8x128xf32>
      %507 = vector.broadcast %77 : f32 to vector<8x128xf32>
      %508 = arith.mulf %497, %507 : vector<8x128xf32>
      %509 = arith.addf %371, %508 : vector<8x128xf32>
      %510 = vector.broadcast %15 : f32 to vector<8x128xf32>
      %511 = arith.mulf %82, %510 : vector<8x128xf32>
      %512 = vector.broadcast %16 : f32 to vector<8x128xf32>
      %513 = arith.mulf %85, %512 : vector<8x128xf32>
      %514 = arith.addf %511, %513 : vector<8x128xf32>
      %515 = vector.broadcast %17 : f32 to vector<8x128xf32>
      %516 = arith.mulf %88, %515 : vector<8x128xf32>
      %517 = arith.addf %514, %516 : vector<8x128xf32>
      %518 = vector.broadcast %18 : f32 to vector<8x128xf32>
      %519 = arith.mulf %91, %518 : vector<8x128xf32>
      %520 = arith.addf %517, %519 : vector<8x128xf32>
      %521 = vector.broadcast %54 : f32 to vector<8x128xf32>
      %522 = arith.addf %520, %521 : vector<8x128xf32>
      %523 = vector.broadcast %15 : f32 to vector<8x128xf32>
      %524 = arith.mulf %94, %523 : vector<8x128xf32>
      %525 = vector.broadcast %16 : f32 to vector<8x128xf32>
      %526 = arith.mulf %97, %525 : vector<8x128xf32>
      %527 = arith.addf %524, %526 : vector<8x128xf32>
      %528 = vector.broadcast %17 : f32 to vector<8x128xf32>
      %529 = arith.mulf %100, %528 : vector<8x128xf32>
      %530 = arith.addf %527, %529 : vector<8x128xf32>
      %531 = vector.broadcast %18 : f32 to vector<8x128xf32>
      %532 = arith.mulf %103, %531 : vector<8x128xf32>
      %533 = arith.addf %530, %532 : vector<8x128xf32>
      %534 = vector.broadcast %54 : f32 to vector<8x128xf32>
      %535 = arith.addf %533, %534 : vector<8x128xf32>
      %536 = vector.broadcast %31 : f32 to vector<8x128xf32>
      %537 = arith.mulf %82, %536 : vector<8x128xf32>
      %538 = vector.broadcast %32 : f32 to vector<8x128xf32>
      %539 = arith.mulf %85, %538 : vector<8x128xf32>
      %540 = arith.addf %537, %539 : vector<8x128xf32>
      %541 = vector.broadcast %33 : f32 to vector<8x128xf32>
      %542 = arith.mulf %88, %541 : vector<8x128xf32>
      %543 = arith.addf %540, %542 : vector<8x128xf32>
      %544 = vector.broadcast %34 : f32 to vector<8x128xf32>
      %545 = arith.mulf %91, %544 : vector<8x128xf32>
      %546 = arith.addf %543, %545 : vector<8x128xf32>
      %547 = vector.broadcast %58 : f32 to vector<8x128xf32>
      %548 = arith.addf %546, %547 : vector<8x128xf32>
      %549 = vector.broadcast %31 : f32 to vector<8x128xf32>
      %550 = arith.mulf %94, %549 : vector<8x128xf32>
      %551 = vector.broadcast %32 : f32 to vector<8x128xf32>
      %552 = arith.mulf %97, %551 : vector<8x128xf32>
      %553 = arith.addf %550, %552 : vector<8x128xf32>
      %554 = vector.broadcast %33 : f32 to vector<8x128xf32>
      %555 = arith.mulf %100, %554 : vector<8x128xf32>
      %556 = arith.addf %553, %555 : vector<8x128xf32>
      %557 = vector.broadcast %34 : f32 to vector<8x128xf32>
      %558 = arith.mulf %103, %557 : vector<8x128xf32>
      %559 = arith.addf %556, %558 : vector<8x128xf32>
      %560 = vector.broadcast %58 : f32 to vector<8x128xf32>
      %561 = arith.addf %559, %560 : vector<8x128xf32>
      %562 = vector.broadcast %47 : f32 to vector<8x128xf32>
      %563 = arith.mulf %82, %562 : vector<8x128xf32>
      %564 = vector.broadcast %48 : f32 to vector<8x128xf32>
      %565 = arith.mulf %85, %564 : vector<8x128xf32>
      %566 = arith.addf %563, %565 : vector<8x128xf32>
      %567 = vector.broadcast %49 : f32 to vector<8x128xf32>
      %568 = arith.mulf %88, %567 : vector<8x128xf32>
      %569 = arith.addf %566, %568 : vector<8x128xf32>
      %570 = vector.broadcast %50 : f32 to vector<8x128xf32>
      %571 = arith.mulf %91, %570 : vector<8x128xf32>
      %572 = arith.addf %569, %571 : vector<8x128xf32>
      %573 = vector.broadcast %62 : f32 to vector<8x128xf32>
      %574 = arith.addf %572, %573 : vector<8x128xf32>
      %575 = vector.broadcast %47 : f32 to vector<8x128xf32>
      %576 = arith.mulf %94, %575 : vector<8x128xf32>
      %577 = vector.broadcast %48 : f32 to vector<8x128xf32>
      %578 = arith.mulf %97, %577 : vector<8x128xf32>
      %579 = arith.addf %576, %578 : vector<8x128xf32>
      %580 = vector.broadcast %49 : f32 to vector<8x128xf32>
      %581 = arith.mulf %100, %580 : vector<8x128xf32>
      %582 = arith.addf %579, %581 : vector<8x128xf32>
      %583 = vector.broadcast %50 : f32 to vector<8x128xf32>
      %584 = arith.mulf %103, %583 : vector<8x128xf32>
      %585 = arith.addf %582, %584 : vector<8x128xf32>
      %586 = vector.broadcast %62 : f32 to vector<8x128xf32>
      %587 = arith.addf %585, %586 : vector<8x128xf32>
      %588 = arith.mulf %522, %548 : vector<8x128xf32>
      %589 = arith.mulf %522, %561 : vector<8x128xf32>
      %590 = arith.maximumf %588, %589 : vector<8x128xf32>
      %591 = arith.subf %588, %590 : vector<8x128xf32>
      %592 = math.exp %591 : vector<8x128xf32>
      %593 = arith.subf %589, %590 : vector<8x128xf32>
      %594 = math.exp %593 : vector<8x128xf32>
      %595 = arith.addf %592, %594 : vector<8x128xf32>
      %596 = tpu.reciprocal %595 {approx = true} : vector<8x128xf32> -> vector<8x128xf32>
      %597 = arith.mulf %595, %596 : vector<8x128xf32>
      %cst_32 = arith.constant 2.000000e+00 : f32
      %598 = vector.broadcast %cst_32 : f32 to vector<8x128xf32>
      %599 = arith.subf %598, %597 : vector<8x128xf32>
      %600 = arith.mulf %596, %599 : vector<8x128xf32>
      %601 = arith.mulf %592, %600 : vector<8x128xf32>
      %602 = arith.mulf %594, %600 : vector<8x128xf32>
      %603 = arith.mulf %601, %574 : vector<8x128xf32>
      %604 = arith.mulf %602, %587 : vector<8x128xf32>
      %605 = arith.addf %603, %604 : vector<8x128xf32>
      %606 = vector.broadcast %66 : f32 to vector<8x128xf32>
      %607 = arith.mulf %605, %606 : vector<8x128xf32>
      %608 = arith.addf %470, %607 : vector<8x128xf32>
      %609 = vector.broadcast %70 : f32 to vector<8x128xf32>
      %610 = arith.mulf %605, %609 : vector<8x128xf32>
      %611 = arith.addf %473, %610 : vector<8x128xf32>
      %612 = vector.broadcast %74 : f32 to vector<8x128xf32>
      %613 = arith.mulf %605, %612 : vector<8x128xf32>
      %614 = arith.addf %476, %613 : vector<8x128xf32>
      %615 = vector.broadcast %78 : f32 to vector<8x128xf32>
      %616 = arith.mulf %605, %615 : vector<8x128xf32>
      %617 = arith.addf %479, %616 : vector<8x128xf32>
      %618 = arith.mulf %535, %548 : vector<8x128xf32>
      %619 = arith.mulf %535, %561 : vector<8x128xf32>
      %620 = arith.maximumf %618, %619 : vector<8x128xf32>
      %621 = arith.subf %618, %620 : vector<8x128xf32>
      %622 = math.exp %621 : vector<8x128xf32>
      %623 = arith.subf %619, %620 : vector<8x128xf32>
      %624 = math.exp %623 : vector<8x128xf32>
      %625 = arith.addf %622, %624 : vector<8x128xf32>
      %626 = tpu.reciprocal %625 {approx = true} : vector<8x128xf32> -> vector<8x128xf32>
      %627 = arith.mulf %625, %626 : vector<8x128xf32>
      %cst_33 = arith.constant 2.000000e+00 : f32
      %628 = vector.broadcast %cst_33 : f32 to vector<8x128xf32>
      %629 = arith.subf %628, %627 : vector<8x128xf32>
      %630 = arith.mulf %626, %629 : vector<8x128xf32>
      %631 = arith.mulf %622, %630 : vector<8x128xf32>
      %632 = arith.mulf %624, %630 : vector<8x128xf32>
      %633 = arith.mulf %631, %574 : vector<8x128xf32>
      %634 = arith.mulf %632, %587 : vector<8x128xf32>
      %635 = arith.addf %633, %634 : vector<8x128xf32>
      %636 = vector.broadcast %66 : f32 to vector<8x128xf32>
      %637 = arith.mulf %635, %636 : vector<8x128xf32>
      %638 = arith.addf %500, %637 : vector<8x128xf32>
      %639 = vector.broadcast %70 : f32 to vector<8x128xf32>
      %640 = arith.mulf %635, %639 : vector<8x128xf32>
      %641 = arith.addf %503, %640 : vector<8x128xf32>
      %642 = vector.broadcast %74 : f32 to vector<8x128xf32>
      %643 = arith.mulf %635, %642 : vector<8x128xf32>
      %644 = arith.addf %506, %643 : vector<8x128xf32>
      %645 = vector.broadcast %78 : f32 to vector<8x128xf32>
      %646 = arith.mulf %635, %645 : vector<8x128xf32>
      %647 = arith.addf %509, %646 : vector<8x128xf32>
      %c0_34 = arith.constant 0 : index
      %c0_35 = arith.constant 0 : index
      %c0_36 = arith.constant 0 : index
      %c0_37 = arith.constant 0 : index
      %648 = vector.load %arg4[%c0_34, %c0_35, %c0_36, %c0_37] : memref<1x8x8x128xf32, #tpu.memory_space<vmem>>, vector<1x1x8x128xf32>
      %649 = vector.shape_cast %648 : vector<1x1x8x128xf32> to vector<8x128xf32>
      %650 = arith.addf %649, %608 : vector<8x128xf32>
      %c0_38 = arith.constant 0 : index
      %c0_39 = arith.constant 0 : index
      %c0_40 = arith.constant 0 : index
      %c0_41 = arith.constant 0 : index
      %651 = vector.load %arg4[%c0_38, %c0_39, %c0_40, %c0_41] : memref<1x8x8x128xf32, #tpu.memory_space<vmem>>, vector<1x1x8x128xf32>
      %652 = vector.shape_cast %651 : vector<1x1x8x128xf32> to vector<8x128xf32>
      %653 = vector.shape_cast %650 : vector<8x128xf32> to vector<1x1x8x128xf32>
      tpu.vector_store %arg4[%c0_38, %c0_39, %c0_40, %c0_41], %653 {strides = array<i32>} : memref<1x8x8x128xf32, #tpu.memory_space<vmem>>, vector<1x1x8x128xf32>,
      %c0_42 = arith.constant 0 : index
      %c1_43 = arith.constant 1 : index
      %c0_44 = arith.constant 0 : index
      %c0_45 = arith.constant 0 : index
      %654 = vector.load %arg4[%c0_42, %c1_43, %c0_44, %c0_45] : memref<1x8x8x128xf32, #tpu.memory_space<vmem>>, vector<1x1x8x128xf32>
      %655 = vector.shape_cast %654 : vector<1x1x8x128xf32> to vector<8x128xf32>
      %656 = arith.addf %655, %638 : vector<8x128xf32>
      %c0_46 = arith.constant 0 : index
      %c1_47 = arith.constant 1 : index
      %c0_48 = arith.constant 0 : index
      %c0_49 = arith.constant 0 : index
      %657 = vector.load %arg4[%c0_46, %c1_47, %c0_48, %c0_49] : memref<1x8x8x128xf32, #tpu.memory_space<vmem>>, vector<1x1x8x128xf32>
      %658 = vector.shape_cast %657 : vector<1x1x8x128xf32> to vector<8x128xf32>
      %659 = vector.shape_cast %656 : vector<8x128xf32> to vector<1x1x8x128xf32>
      tpu.vector_store %arg4[%c0_46, %c1_47, %c0_48, %c0_49], %659 {strides = array<i32>} : memref<1x8x8x128xf32, #tpu.memory_space<vmem>>, vector<1x1x8x128xf32>,
      %c0_50 = arith.constant 0 : index
      %c2_51 = arith.constant 2 : index
      %c0_52 = arith.constant 0 : index
      %c0_53 = arith.constant 0 : index
      %660 = vector.load %arg4[%c0_50, %c2_51, %c0_52, %c0_53] : memref<1x8x8x128xf32, #tpu.memory_space<vmem>>, vector<1x1x8x128xf32>
      %661 = vector.shape_cast %660 : vector<1x1x8x128xf32> to vector<8x128xf32>
      %662 = arith.addf %661, %611 : vector<8x128xf32>
      %c0_54 = arith.constant 0 : index
      %c2_55 = arith.constant 2 : index
      %c0_56 = arith.constant 0 : index
      %c0_57 = arith.constant 0 : index
      %663 = vector.load %arg4[%c0_54, %c2_55, %c0_56, %c0_57] : memref<1x8x8x128xf32, #tpu.memory_space<vmem>>, vector<1x1x8x128xf32>
      %664 = vector.shape_cast %663 : vector<1x1x8x128xf32> to vector<8x128xf32>
      %665 = vector.shape_cast %662 : vector<8x128xf32> to vector<1x1x8x128xf32>
      tpu.vector_store %arg4[%c0_54, %c2_55, %c0_56, %c0_57], %665 {strides = array<i32>} : memref<1x8x8x128xf32, #tpu.memory_space<vmem>>, vector<1x1x8x128xf32>,
      %c0_58 = arith.constant 0 : index
      %c3_59 = arith.constant 3 : index
      %c0_60 = arith.constant 0 : index
      %c0_61 = arith.constant 0 : index
      %666 = vector.load %arg4[%c0_58, %c3_59, %c0_60, %c0_61] : memref<1x8x8x128xf32, #tpu.memory_space<vmem>>, vector<1x1x8x128xf32>
      %667 = vector.shape_cast %666 : vector<1x1x8x128xf32> to vector<8x128xf32>
      %668 = arith.addf %667, %641 : vector<8x128xf32>
      %c0_62 = arith.constant 0 : index
      %c3_63 = arith.constant 3 : index
      %c0_64 = arith.constant 0 : index
      %c0_65 = arith.constant 0 : index
      %669 = vector.load %arg4[%c0_62, %c3_63, %c0_64, %c0_65] : memref<1x8x8x128xf32, #tpu.memory_space<vmem>>, vector<1x1x8x128xf32>
      %670 = vector.shape_cast %669 : vector<1x1x8x128xf32> to vector<8x128xf32>
      %671 = vector.shape_cast %668 : vector<8x128xf32> to vector<1x1x8x128xf32>
      tpu.vector_store %arg4[%c0_62, %c3_63, %c0_64, %c0_65], %671 {strides = array<i32>} : memref<1x8x8x128xf32, #tpu.memory_space<vmem>>, vector<1x1x8x128xf32>,
      %c0_66 = arith.constant 0 : index
      %c4_67 = arith.constant 4 : index
      %c0_68 = arith.constant 0 : index
      %c0_69 = arith.constant 0 : index
      %672 = vector.load %arg4[%c0_66, %c4_67, %c0_68, %c0_69] : memref<1x8x8x128xf32, #tpu.memory_space<vmem>>, vector<1x1x8x128xf32>
      %673 = vector.shape_cast %672 : vector<1x1x8x128xf32> to vector<8x128xf32>
      %674 = arith.addf %673, %614 : vector<8x128xf32>
      %c0_70 = arith.constant 0 : index
      %c4_71 = arith.constant 4 : index
      %c0_72 = arith.constant 0 : index
      %c0_73 = arith.constant 0 : index
      %675 = vector.load %arg4[%c0_70, %c4_71, %c0_72, %c0_73] : memref<1x8x8x128xf32, #tpu.memory_space<vmem>>, vector<1x1x8x128xf32>
      %676 = vector.shape_cast %675 : vector<1x1x8x128xf32> to vector<8x128xf32>
      %677 = vector.shape_cast %674 : vector<8x128xf32> to vector<1x1x8x128xf32>
      tpu.vector_store %arg4[%c0_70, %c4_71, %c0_72, %c0_73], %677 {strides = array<i32>} : memref<1x8x8x128xf32, #tpu.memory_space<vmem>>, vector<1x1x8x128xf32>,
      %c0_74 = arith.constant 0 : index
      %c5_75 = arith.constant 5 : index
      %c0_76 = arith.constant 0 : index
      %c0_77 = arith.constant 0 : index
      %678 = vector.load %arg4[%c0_74, %c5_75, %c0_76, %c0_77] : memref<1x8x8x128xf32, #tpu.memory_space<vmem>>, vector<1x1x8x128xf32>
      %679 = vector.shape_cast %678 : vector<1x1x8x128xf32> to vector<8x128xf32>
      %680 = arith.addf %679, %644 : vector<8x128xf32>
      %c0_78 = arith.constant 0 : index
      %c5_79 = arith.constant 5 : index
      %c0_80 = arith.constant 0 : index
      %c0_81 = arith.constant 0 : index
      %681 = vector.load %arg4[%c0_78, %c5_79, %c0_80, %c0_81] : memref<1x8x8x128xf32, #tpu.memory_space<vmem>>, vector<1x1x8x128xf32>
      %682 = vector.shape_cast %681 : vector<1x1x8x128xf32> to vector<8x128xf32>
      %683 = vector.shape_cast %680 : vector<8x128xf32> to vector<1x1x8x128xf32>
      tpu.vector_store %arg4[%c0_78, %c5_79, %c0_80, %c0_81], %683 {strides = array<i32>} : memref<1x8x8x128xf32, #tpu.memory_space<vmem>>, vector<1x1x8x128xf32>,
      %c0_82 = arith.constant 0 : index
      %c6_83 = arith.constant 6 : index
      %c0_84 = arith.constant 0 : index
      %c0_85 = arith.constant 0 : index
      %684 = vector.load %arg4[%c0_82, %c6_83, %c0_84, %c0_85] : memref<1x8x8x128xf32, #tpu.memory_space<vmem>>, vector<1x1x8x128xf32>
      %685 = vector.shape_cast %684 : vector<1x1x8x128xf32> to vector<8x128xf32>
      %686 = arith.addf %685, %617 : vector<8x128xf32>
      %c0_86 = arith.constant 0 : index
      %c6_87 = arith.constant 6 : index
      %c0_88 = arith.constant 0 : index
      %c0_89 = arith.constant 0 : index
      %687 = vector.load %arg4[%c0_86, %c6_87, %c0_88, %c0_89] : memref<1x8x8x128xf32, #tpu.memory_space<vmem>>, vector<1x1x8x128xf32>
      %688 = vector.shape_cast %687 : vector<1x1x8x128xf32> to vector<8x128xf32>
      %689 = vector.shape_cast %686 : vector<8x128xf32> to vector<1x1x8x128xf32>
      tpu.vector_store %arg4[%c0_86, %c6_87, %c0_88, %c0_89], %689 {strides = array<i32>} : memref<1x8x8x128xf32, #tpu.memory_space<vmem>>, vector<1x1x8x128xf32>,
      %c0_90 = arith.constant 0 : index
      %c7_91 = arith.constant 7 : index
      %c0_92 = arith.constant 0 : index
      %c0_93 = arith.constant 0 : index
      %690 = vector.load %arg4[%c0_90, %c7_91, %c0_92, %c0_93] : memref<1x8x8x128xf32, #tpu.memory_space<vmem>>, vector<1x1x8x128xf32>
      %691 = vector.shape_cast %690 : vector<1x1x8x128xf32> to vector<8x128xf32>
      %692 = arith.addf %691, %647 : vector<8x128xf32>
      %c0_94 = arith.constant 0 : index
      %c7_95 = arith.constant 7 : index
      %c0_96 = arith.constant 0 : index
      %c0_97 = arith.constant 0 : index
      %693 = vector.load %arg4[%c0_94, %c7_95, %c0_96, %c0_97] : memref<1x8x8x128xf32, #tpu.memory_space<vmem>>, vector<1x1x8x128xf32>
      %694 = vector.shape_cast %693 : vector<1x1x8x128xf32> to vector<8x128xf32>
      %695 = vector.shape_cast %692 : vector<8x128xf32> to vector<1x1x8x128xf32>
      tpu.vector_store %arg4[%c0_94, %c7_95, %c0_96, %c0_97], %695 {strides = array<i32>} : memref<1x8x8x128xf32, #tpu.memory_space<vmem>>, vector<1x1x8x128xf32>,
    }
    %c2_i32_2 = arith.constant 2 : i32
    return
  }
  func.func @transform_0(%arg0: i32, %arg1: i32) -> i32 {
    %c0_i32 = arith.constant 0 : i32
    %c0_i32_0 = arith.constant 0 : i32
    return %c0_i32 : i32
  }
  func.func @transform_1(%arg0: i32, %arg1: i32) -> (i32, i32, i32, i32) {
    %c2_i32 = arith.constant 2 : i32
    %0 = arith.muli %arg0, %c2_i32 : i32
    %1 = arith.addi %0, %arg1 : i32
    %c0_i32 = arith.constant 0 : i32
    %c0_i32_0 = arith.constant 0 : i32
    %c0_i32_1 = arith.constant 0 : i32
    %c0_i32_2 = arith.constant 0 : i32
    return %c0_i32, %1, %c0_i32_0, %c0_i32_1 : i32, i32, i32, i32
  }
  func.func @transform_2(%arg0: i32, %arg1: i32) -> (i32, i32, i32, i32) {
    %c0_i32 = arith.constant 0 : i32
    %c0_i32_0 = arith.constant 0 : i32
    %c0_i32_1 = arith.constant 0 : i32
    %c0_i32_2 = arith.constant 0 : i32
    return %arg0, %c0_i32, %c0_i32_0, %c0_i32_1 : i32, i32, i32, i32
  }
}

</mosaic_0001>

<llo_original>
// kernel: tpu_custom_call.1
$region0: #{tpu_custom_call.1}
  #allocation0 [shape = 'u32[]', space=smem, size = 0x4, offset = 0x4, fixed_abs, tag = 'smem constant byte address 0x4 - core index']
  #allocation1 [shape = 'u32[144,128]{1,0:T(1,128)}', space=vmem, size = 0x12000, scoped, tag = 'internal scratch']
  #allocation8 [shape = 's32[]', space=sflag, size = 0x4, offset = 0, fixed_abs, tag = 'sflag constant byte address 0x0 - dummy sync flag']
  %s0 = inlined_call_operand.hbm [shape: f32[76], index: 0, kind: input, shape index: {}]
  %s1 = inlined_call_operand.hbm [shape: f32[8,4,8,128], index: 1, kind: input, shape index: {}]
  %s2 = inlined_call_operand.hbm [shape: f32[1,8,8,128], index: 2, kind: output, shape index: {}]
  %s3 = sld [smem:[#allocation0]]
  $region60: #{tpu_custom_call.1} parent=0
    _
  %s5 = ssub.s32 1, %s3
  %s6 = scalar_select 0, %s5, %s3
  $region1: #{tpu_custom_call.1} parent=0
    #allocation2 [shape = 'u8[512]{0}', space=smem, size = 0x200, scoped, tag = 'input window, operand 0, single buffered']
    #allocation3 [shape = 's32[2]{0}', space=sflag, size = 0x8, scoped, tag = 'scoped memory for tpu_custom_call.1']
    #allocation4 [shape = 's32[2]{0}', space=sflag, size = 0x8, scoped, tag = 'scoped memory for tpu_custom_call.1']
    #allocation5 [shape = 's32[2]{0}', space=sflag, size = 0x8, scoped, tag = 'scoped memory for tpu_custom_call.1']
    #allocation6 [shape = 'u8[131072]{0}', space=vmem, size = 0x20000, scoped, tag = 'input window, operand 1']
    #allocation7 [shape = 'u8[32768]{0}', space=vmem, size = 0x8000, scoped, tag = 'output window, operand 0, single buffered']
    %7 = vsyncpa [#allocation5], 0
    %8 = vsyncpa [#allocation3], 0
    %s9 = scalar_lea.sflag [#allocation3], 1
    %10 = vsyncpa %s9, 0
    %11 = vsyncpa [#allocation4], 0
    loop: start=0, step=1, limit=4
    $region2: #{tpu_custom_call.1} parent=1 // loop_pre_header
      _
    $region3: #{tpu_custom_call.1} parent=1 // loop_header
      %s13 = sphi 0, %s17
      %p14 = scmp.ge.s32.totalorder %s13, 4
      %s20 = sphi 0, %s32
      %s21 = sphi 0, %s28
      %s22 = sphi 0, %s20
      %s23 = sphi 0, %s21
      %s24 = sphi 0, %s22
      %s25 = sphi 0, %s23
      %s33 = sphi 0, %s33
      %s35 = sphi 0, %s33
      %s36 = sphi 0, %s35
      %s50 = sphi 0, %s36
      %s60 = sphi 0, %s62
      %s63 = sphi 0, %s60
      %s64 = sphi 0, %s63
      %s80 = sphi 0, %s64
      %s86 = sphi 0, %s88
      %s89 = sphi 0, %s86
      %s90 = sphi 0, %s89
      %s106 = sphi 0, %s90
    $region4: #{tpu_custom_call.1} parent=1 // loop_header_branch
      %16 = sbr.rel (%p14) target = $region8
    $region5: #{tpu_custom_call.1} parent=1 // loop_body
      %s18 = ssub.s32 %s13, 1
      %s19 = ssub.s32 %s13, 2
      %s26 = sadd.s32 1, %s21
      %p27 = scmp.ge.s32.totalorder %s26, 2
      %s28 = scalar_select %p27, 0, %s26
      %s29 = sadd.s32 1, %s20
      %s30 = scalar_select %p27, %s29, %s20
      %p31 = scmp.ge.s32.totalorder %s30, 1
      %s32 = scalar_select %p31, 0, %s30
      %s34 = sadd.s32 %s33, 1
      %p37 = scmp.eq.s32.totalorder %s13, 1
      %p38 = scmp.ne.s32.totalorder %s33, %s35
      %p39 = scmp.eq.s32.totalorder %s13, 0
      %p40 = por %p38, %p39
      %p41 = scmp.ne.s32.totalorder %s33, %s35
      %p42 = scmp.eq.s32.totalorder %s18, 1
      %p43 = por %p41, %p42
      %p44 = scmp.ne.s32.totalorder %s35, %s36
      %p45 = scmp.eq.s32.totalorder %s18, 0
      %p46 = por %p44, %p45
      %p47 = scmp.ne.s32.totalorder %s35, %s36
      %p48 = scmp.eq.s32.totalorder %s19, 1
      %p49 = por %p47, %p48
      %p51 = scmp.ne.s32.totalorder %s36, %s50
      %p52 = scmp.eq.s32.totalorder %s19, 0
      %p53 = por %p51, %p52
      %s54 = smul.u32 %s20, 2
      %s55 = sadd.s32 %s54, %s21
      %s56 = smul.u32 %s32, 2
      %s57 = sadd.s32 %s56, %s28
      %s58 = ssub.s32 %s55, %s57
      %p59 = scmp.eq.s32.totalorder %s58, 0
      %s61 = sadd.s32 %s60, 1
      %s62 = scalar_select %p59, %s60, %s61
      %p65 = pneg %p59
      %p66 = scmp.eq.s32.totalorder %s13, 1
      %p67 = por %p65, %p66
      %p68 = scmp.ne.s32.totalorder %s60, %s63
      %p69 = scmp.eq.s32.totalorder %s13, 0
      %p70 = por %p68, %p69
      %p71 = scmp.ne.s32.totalorder %s60, %s63
      %p72 = scmp.eq.s32.totalorder %s18, 1
      %p73 = por %p71, %p72
      %p74 = scmp.ne.s32.totalorder %s63, %s64
      %p75 = scmp.eq.s32.totalorder %s18, 0
      %p76 = por %p74, %p75
      %p77 = scmp.ne.s32.totalorder %s63, %s64
      %p78 = scmp.eq.s32.totalorder %s19, 1
      %p79 = por %p77, %p78
      %p81 = scmp.ne.s32.totalorder %s64, %s80
      %p82 = scmp.eq.s32.totalorder %s19, 0
      %p83 = por %p81, %p82
      %s84 = ssub.s32 %s20, %s32
      %p85 = scmp.eq.s32.totalorder %s84, 0
      %s87 = sadd.s32 %s86, 1
      %s88 = scalar_select %p85, %s86, %s87
      %p91 = pneg %p85
      %p92 = scmp.eq.s32.totalorder %s13, 1
      %p93 = por %p91, %p92
      %p94 = scmp.ne.s32.totalorder %s86, %s89
      %p95 = scmp.eq.s32.totalorder %s13, 0
      %p96 = por %p94, %p95
      %p97 = scmp.ne.s32.totalorder %s86, %s89
      %p98 = scmp.eq.s32.totalorder %s18, 1
      %p99 = por %p97, %p98
      %p100 = scmp.ne.s32.totalorder %s89, %s90
      %p101 = scmp.eq.s32.totalorder %s18, 0
      %p102 = por %p100, %p101
      %p103 = scmp.ne.s32.totalorder %s89, %s90
      %p104 = scmp.eq.s32.totalorder %s19, 1
      %p105 = por %p103, %p104
      %p107 = scmp.ne.s32.totalorder %s90, %s106
      %p108 = scmp.eq.s32.totalorder %s19, 0
      %p109 = por %p107, %p108
      %p110 = scmp.le.s32.totalorder 1, %s13
      %p111 = scmp.lt.s32.totalorder %s13, 3
      %p112 = pnand %p110, %p111
      %p113 = pneg %p112
      // Predicated region
      $region9: #{tpu_custom_call.1} parent=5 // pred_check
        _
      $region10: #{tpu_custom_call.1} parent=5 // pred_check_branch
        %115 = sbr.rel (%p112) target = $region12
      $region11: #{tpu_custom_call.1} parent=5 // pred_region
        %s116 = ssub.s32 %s13, 1
        // Predicated region
        $region13: #{tpu_custom_call.1} parent=11 // pred_check
          %p117 = pneg %p46
        $region14: #{tpu_custom_call.1} parent=11 // pred_check_branch
          %119 = sbr.rel (%p117) target = $region16
        $region15: #{tpu_custom_call.1} parent=11 // pred_region
          %s121 = ssub.s32 16, 16
          %122 = vsyncadd [#allocation5], %s121
          %125 = dma.hbm_to_smem %s0, 16, [#allocation2], [#allocation5]
        $region16: #{tpu_custom_call.1} parent=11 // pred_fallthru
          _
      $region12: #{tpu_custom_call.1} parent=5 // pred_fallthru
        _
      %p126 = scmp.lt.s32.totalorder %s13, 2
      // Predicated region
      $region17: #{tpu_custom_call.1} parent=5 // pred_check
        %p127 = pneg %p126
      $region18: #{tpu_custom_call.1} parent=5 // pred_check_branch
        %129 = sbr.rel (%p127) target = $region20
      $region19: #{tpu_custom_call.1} parent=5 // pred_region
        // Predicated region
        $region21: #{tpu_custom_call.1} parent=19 // pred_check
          %p130 = pneg %p70
        $region22: #{tpu_custom_call.1} parent=19 // pred_check_branch
          %132 = sbr.rel (%p130) target = $region24
        $region23: #{tpu_custom_call.1} parent=19 // pred_region
          #allocation9 [shape = 'u32[6]{0}', space=smem, size = 0x18, scoped, tag = 'DMA stride descriptor']
          %s133 = sand.u32 %s60, 1
          %s134 = scalar_lea.sflag [#allocation3], %s133
          %s135 = sand.u32 %s60, 1
          %s136 = smul.addr %s135, 128
          %s137 = scalar_lea.vmem [#allocation6], %s136
          %s138 = smul.u32 %s20, 2
          %s139 = sadd.s32 %s138, %s21
          %s140 = smul.u32 2, %s139
          %s142 = ssub.s32 2048, 2048
          %143 = vsyncadd %s134, %s142
          %s144 = smul.addr %s140, 128
          %s145 = scalar_lea.hbm %s1, %s144
          %s147 = sshll.u32 1, 14
          %s148 = sxor.u32 4294967295, %s147
          %s150 = sld [smem:[#allocation0]]
          %s151 = sadd.s32 2, %s150
          %s153 = sshll.u32 7, 26
          %s154 = sxor.u32 4294967295, %s153
          %s155 = sand.u32 0, %s154
          %s156 = sshll.u32 %s151, 26
          %s157 = sor.u32 %s155, %s156
          %s158 = sshll.u32 %s137, 4
          %s159 = int_to_ptr.vmem [resolvable:$true] %s158
          %165 = sst [smem:[#allocation9]] 512
          %s166 = scalar_lea.smem [#allocation9], 1
          %167 = sst [smem:[%s166]] 256
          %s168 = scalar_lea.smem [#allocation9], 2
          %169 = sst [smem:[%s168]] 2
          %s170 = scalar_lea.smem [#allocation9], 3
          %171 = sst [smem:[%s170]] 128
          %s172 = scalar_lea.smem [#allocation9], 4
          %173 = sst [smem:[%s172]] 128
          %s174 = scalar_lea.smem [#allocation9], 5
          %175 = sst [smem:[%s174]] 8
          %177 = dma.general %s145, 2048, %s159, %s134, [#allocation8], [#allocation9], %s157, 0
        $region24: #{tpu_custom_call.1} parent=19 // pred_fallthru
          _
      $region20: #{tpu_custom_call.1} parent=5 // pred_fallthru
        _
      %p178 = scmp.le.s32.totalorder 1, %s13
      %p179 = scmp.lt.s32.totalorder %s13, 3
      %p180 = pnand %p178, %p179
      %p181 = pneg %p180
      // Predicated region
      $region25: #{tpu_custom_call.1} parent=5 // pred_check
        _
      $region26: #{tpu_custom_call.1} parent=5 // pred_check_branch
        %183 = sbr.rel (%p180) target = $region28
      $region27: #{tpu_custom_call.1} parent=5 // pred_region
        %s184 = ssub.s32 %s13, 1
        // Predicated region
        $region29: #{tpu_custom_call.1} parent=27 // pred_check
          %p185 = pneg %p46
        $region30: #{tpu_custom_call.1} parent=27 // pred_check_branch
          %187 = sbr.rel (%p185) target = $region32
        $region31: #{tpu_custom_call.1} parent=27 // pred_region
          %188 = dma.done [#allocation5], 16
        $region32: #{tpu_custom_call.1} parent=27 // pred_fallthru
          _
        %s189 = sand.u32 %s63, 1
        %s190 = scalar_lea.sflag [#allocation3], %s189
        %s191 = sand.u32 %s63, 1
        %s192 = smul.addr %s191, 128
        %s193 = scalar_lea.vmem [#allocation6], %s192
        // Predicated region
        $region33: #{tpu_custom_call.1} parent=27 // pred_check
          %p194 = pneg %p76
        $region34: #{tpu_custom_call.1} parent=27 // pred_check_branch
          %196 = sbr.rel (%p194) target = $region36
        $region35: #{tpu_custom_call.1} parent=27 // pred_region
          %197 = dma.done %s190, 2048
        $region36: #{tpu_custom_call.1} parent=27 // pred_fallthru
          _
        %198 = sfence
        %p199 = pneg %p46
        %p200 = pneg %p43
        %s201 = sand.u32 %s63, 1
        %s202 = scalar_lea.sflag [#allocation3], %s201
        %s203 = sand.u32 %s63, 1
        %s204 = smul.addr %s203, 128
        %s205 = scalar_lea.vmem [#allocation6], %s204
        %p206 = pneg %p76
        %p207 = pneg %p73
        %p208 = pneg %p102
        %p209 = pneg %p99
        %s210 = smul.u32 %s22, 2
        %s211 = sadd.s32 %s210, %s23
        %s212 = smul.u32 2, %s211
        %p213 = scmp.eq.s32.totalorder %s23, 0
        // Predicated region
        $region37: #{tpu_custom_call.1} parent=27 // pred_check
          %p214 = pneg %p213
        $region38: #{tpu_custom_call.1} parent=27 // pred_check_branch
          %216 = sbr.rel (%p214) target = $region40
        $region39: #{tpu_custom_call.1} parent=27 // pred_region
          %217 = vst [vmem:[#allocation7] sm:$0xff] 0.0
          %218 = vst [vmem:[#allocation7 + $0x8] sm:$0xff] 0.0
          %219 = vst [vmem:[#allocation7 + $0x10] sm:$0xff] 0.0
          %220 = vst [vmem:[#allocation7 + $0x18] sm:$0xff] 0.0
          %221 = vst [vmem:[#allocation7 + $0x20] sm:$0xff] 0.0
          %222 = vst [vmem:[#allocation7 + $0x28] sm:$0xff] 0.0
          %223 = vst [vmem:[#allocation7 + $0x30] sm:$0xff] 0.0
          %224 = vst [vmem:[#allocation7 + $0x38] sm:$0xff] 0.0
        $region40: #{tpu_custom_call.1} parent=27 // pred_fallthru
          _
        %s225 = sld [smem:[#allocation2]]
        %s226 = sld [smem:[#allocation2 + $0x1]]
        %s227 = sld [smem:[#allocation2 + $0x2]]
        %s228 = sld [smem:[#allocation2 + $0x3]]
        %s229 = sld [smem:[#allocation2 + $0x4]]
        %s230 = sld [smem:[#allocation2 + $0x5]]
        %s231 = sld [smem:[#allocation2 + $0x6]]
        %s232 = sld [smem:[#allocation2 + $0x7]]
        %s233 = sld [smem:[#allocation2 + $0x8]]
        %s234 = sld [smem:[#allocation2 + $0x9]]
        %s235 = sld [smem:[#allocation2 + $0xa]]
        %s236 = sld [smem:[#allocation2 + $0xb]]
        %s237 = sld [smem:[#allocation2 + $0xc]]
        %s238 = sld [smem:[#allocation2 + $0xd]]
        %s239 = sld [smem:[#allocation2 + $0xe]]
        %s240 = sld [smem:[#allocation2 + $0xf]]
        %s241 = sld [smem:[#allocation2 + $0x10]]
        %s242 = sld [smem:[#allocation2 + $0x11]]
        %s243 = sld [smem:[#allocation2 + $0x12]]
        %s244 = sld [smem:[#allocation2 + $0x13]]
        %s245 = sld [smem:[#allocation2 + $0x14]]
        %s246 = sld [smem:[#allocation2 + $0x15]]
        %s247 = sld [smem:[#allocation2 + $0x16]]
        %s248 = sld [smem:[#allocation2 + $0x17]]
        %s249 = sld [smem:[#allocation2 + $0x18]]
        %s250 = sld [smem:[#allocation2 + $0x19]]
        %s251 = sld [smem:[#allocation2 + $0x1a]]
        %s252 = sld [smem:[#allocation2 + $0x1b]]
        %s253 = sld [smem:[#allocation2 + $0x1c]]
        %s254 = sld [smem:[#allocation2 + $0x1d]]
        %s255 = sld [smem:[#allocation2 + $0x1e]]
        %s256 = sld [smem:[#allocation2 + $0x1f]]
        %s257 = sld [smem:[#allocation2 + $0x20]]
        %s258 = sld [smem:[#allocation2 + $0x21]]
        %s259 = sld [smem:[#allocation2 + $0x22]]
        %s260 = sld [smem:[#allocation2 + $0x23]]
        %s261 = sld [smem:[#allocation2 + $0x24]]
        %s262 = sld [smem:[#allocation2 + $0x25]]
        %s263 = sld [smem:[#allocation2 + $0x26]]
        %s264 = sld [smem:[#allocation2 + $0x27]]
        %s265 = sld [smem:[#allocation2 + $0x28]]
        %s266 = sld [smem:[#allocation2 + $0x29]]
        %s267 = sld [smem:[#allocation2 + $0x2a]]
        %s268 = sld [smem:[#allocation2 + $0x2b]]
        %s269 = sld [smem:[#allocation2 + $0x2c]]
        %s270 = sld [smem:[#allocation2 + $0x2d]]
        %s271 = sld [smem:[#allocation2 + $0x2e]]
        %s272 = sld [smem:[#allocation2 + $0x2f]]
        %s273 = sld [smem:[#allocation2 + $0x30]]
        %s274 = sld [smem:[#allocation2 + $0x31]]
        %s275 = sld [smem:[#allocation2 + $0x32]]
        %s276 = sld [smem:[#allocation2 + $0x33]]
        %s277 = sld [smem:[#allocation2 + $0x34]]
        %s278 = sld [smem:[#allocation2 + $0x35]]
        %s279 = sld [smem:[#allocation2 + $0x36]]
        %s280 = sld [smem:[#allocation2 + $0x37]]
        %s281 = sld [smem:[#allocation2 + $0x38]]
        %s282 = sld [smem:[#allocation2 + $0x39]]
        %s283 = sld [smem:[#allocation2 + $0x3a]]
        %s284 = sld [smem:[#allocation2 + $0x3b]]
        %s285 = sld [smem:[#allocation2 + $0x3c]]
        %s286 = sld [smem:[#allocation2 + $0x3d]]
        %s287 = sld [smem:[#allocation2 + $0x3e]]
        %s288 = sld [smem:[#allocation2 + $0x3f]]
        %s289 = sld [smem:[#allocation2 + $0x40]]
        %s290 = sld [smem:[#allocation2 + $0x41]]
        %s291 = sld [smem:[#allocation2 + $0x42]]
        %s292 = sld [smem:[#allocation2 + $0x43]]
        %s293 = sld [smem:[#allocation2 + $0x44]]
        %s294 = sld [smem:[#allocation2 + $0x45]]
        %s295 = sld [smem:[#allocation2 + $0x46]]
        %s296 = sld [smem:[#allocation2 + $0x47]]
        %s297 = sld [smem:[#allocation2 + $0x48]]
        %s298 = sld [smem:[#allocation2 + $0x49]]
        %s299 = sld [smem:[#allocation2 + $0x4a]]
        %s300 = sld [smem:[#allocation2 + $0x4b]]
        loop: start=0, step=1, limit=2
        $region41: #{tpu_custom_call.1} parent=27 // loop_pre_header
          _
        $region42: #{tpu_custom_call.1} parent=27 // loop_header
          %s302 = sphi 0, %s306
          %p303 = scmp.ge.s32.totalorder %s302, 2
        $region43: #{tpu_custom_call.1} parent=27 // loop_header_branch
          %305 = sbr.rel (%p303) target = $region47
        $region44: #{tpu_custom_call.1} parent=27 // loop_body
          %s307 = smul.u32 %s302, 8
          %s308 = scalar_lea.vmem %s193, %s307 [#allocation6]
          %v309 = vld [vmem:[%s308] sm:$0xff]
          %s310 = sadd.s32 %s307, 16
          %s311 = scalar_lea.vmem %s193, %s310 [#allocation6]
          %v312 = vld [vmem:[%s311] sm:$0xff]
          %s313 = sadd.s32 %s307, 32
          %s314 = scalar_lea.vmem %s193, %s313 [#allocation6]
          %v315 = vld [vmem:[%s314] sm:$0xff]
          %s316 = sadd.s32 %s307, 48
          %s317 = scalar_lea.vmem %s193, %s316 [#allocation6]
          %v318 = vld [vmem:[%s317] sm:$0xff]
          %s319 = sadd.s32 %s307, 64
          %s320 = scalar_lea.vmem %s193, %s319 [#allocation6]
          %v321 = vld [vmem:[%s320] sm:$0xff]
          %s322 = sadd.s32 %s307, 80
          %s323 = scalar_lea.vmem %s193, %s322 [#allocation6]
          %v324 = vld [vmem:[%s323] sm:$0xff]
          %s325 = sadd.s32 %s307, 96
          %s326 = scalar_lea.vmem %s193, %s325 [#allocation6]
          %v327 = vld [vmem:[%s326] sm:$0xff]
          %s328 = sadd.s32 %s307, 112
          %s329 = scalar_lea.vmem %s193, %s328 [#allocation6]
          %v330 = vld [vmem:[%s329] sm:$0xff]
          %v331 = vstv %s225
          %v332 = vmul.f32 %v309, %v331
          %v333 = vstv %s226
          %v334 = vmul.f32 %v312, %v333
          %v335 = vadd.f32 %v332, %v334
          %v336 = vstv %s227
          %v337 = vmul.f32 %v315, %v336
          %v338 = vadd.f32 %v335, %v337
          %v339 = vstv %s228
          %v340 = vmul.f32 %v318, %v339
          %v341 = vadd.f32 %v338, %v340
          %v342 = vstv %s273
          %v343 = vadd.f32 %v341, %v342
          %v344 = vmul.f32 %v321, %v331
          %v345 = vmul.f32 %v324, %v333
          %v346 = vadd.f32 %v344, %v345
          %v347 = vmul.f32 %v327, %v336
          %v348 = vadd.f32 %v346, %v347
          %v349 = vmul.f32 %v330, %v339
          %v350 = vadd.f32 %v348, %v349
          %v351 = vadd.f32 %v350, %v342
          %v352 = vstv %s241
          %v353 = vmul.f32 %v309, %v352
          %v354 = vstv %s242
          %v355 = vmul.f32 %v312, %v354
          %v356 = vadd.f32 %v353, %v355
          %v357 = vstv %s243
          %v358 = vmul.f32 %v315, %v357
          %v359 = vadd.f32 %v356, %v358
          %v360 = vstv %s244
          %v361 = vmul.f32 %v318, %v360
          %v362 = vadd.f32 %v359, %v361
          %v363 = vstv %s277
          %v364 = vadd.f32 %v362, %v363
          %v365 = vmul.f32 %v321, %v352
          %v366 = vmul.f32 %v324, %v354
          %v367 = vadd.f32 %v365, %v366
          %v368 = vmul.f32 %v327, %v357
          %v369 = vadd.f32 %v367, %v368
          %v370 = vmul.f32 %v330, %v360
          %v371 = vadd.f32 %v369, %v370
          %v372 = vadd.f32 %v371, %v363
          %v373 = vstv %s257
          %v374 = vmul.f32 %v309, %v373
          %v375 = vstv %s258
          %v376 = vmul.f32 %v312, %v375
          %v377 = vadd.f32 %v374, %v376
          %v378 = vstv %s259
          %v379 = vmul.f32 %v315, %v378
          %v380 = vadd.f32 %v377, %v379
          %v381 = vstv %s260
          %v382 = vmul.f32 %v318, %v381
          %v383 = vadd.f32 %v380, %v382
          %v384 = vstv %s281
          %v385 = vadd.f32 %v383, %v384
          %v386 = vmul.f32 %v321, %v373
          %v387 = vmul.f32 %v324, %v375
          %v388 = vadd.f32 %v386, %v387
          %v389 = vmul.f32 %v327, %v378
          %v390 = vadd.f32 %v388, %v389
          %v391 = vmul.f32 %v330, %v381
          %v392 = vadd.f32 %v390, %v391
          %v393 = vadd.f32 %v392, %v384
          %v394 = vmul.f32 %v343, %v364
          %v395 = vmul.f32 %v343, %v372
          %v396 = vmax.f32 %v394, %v395
          %v397 = vsub.f32 %v394, %v396
          %v398 = vmul.f32 %v397, 1.442695
          %v399 = vpow.pop %v398
          %v400 = vsub.f32 %v395, %v396
          %v401 = vmul.f32 %v400, 1.442695
          %v402 = vpow.pop %v401
          %v403 = vadd.f32 %v399, %v402
          %v404 = vrcp.pop %v403
          %v405 = vmul.f32 %v403, %v404
          %v406 = vsub.f32 2.0, %v405
          %v407 = vmul.f32 %v404, %v406
          %v408 = vmul.f32 %v399, %v407
          %v409 = vmul.f32 %v402, %v407
          %v410 = vmul.f32 %v408, %v385
          %v411 = vmul.f32 %v409, %v393
          %v412 = vadd.f32 %v410, %v411
          %v413 = vstv %s285
          %v414 = vmul.f32 %v412, %v413
          %v415 = vstv %s289
          %v416 = vmul.f32 %v412, %v415
          %v417 = vstv %s293
          %v418 = vmul.f32 %v412, %v417
          %v419 = vstv %s297
          %v420 = vmul.f32 %v412, %v419
          %v421 = vmul.f32 %v351, %v364
          %v422 = vmul.f32 %v351, %v372
          %v423 = vmax.f32 %v421, %v422
          %v424 = vsub.f32 %v421, %v423
          %v425 = vmul.f32 %v424, 1.442695
          %v426 = vpow.pop %v425
          %v427 = vsub.f32 %v422, %v423
          %v428 = vmul.f32 %v427, 1.442695
          %v429 = vpow.pop %v428
          %v430 = vadd.f32 %v426, %v429
          %v431 = vrcp.pop %v430
          %v432 = vmul.f32 %v430, %v431
          %v433 = vsub.f32 2.0, %v432
          %v434 = vmul.f32 %v431, %v433
          %v435 = vmul.f32 %v426, %v434
          %v436 = vmul.f32 %v429, %v434
          %v437 = vmul.f32 %v435, %v385
          %v438 = vmul.f32 %v436, %v393
          %v439 = vadd.f32 %v437, %v438
          %v440 = vmul.f32 %v439, %v413
          %v441 = vmul.f32 %v439, %v415
          %v442 = vmul.f32 %v439, %v417
          %v443 = vmul.f32 %v439, %v419
          %v444 = vstv %s229
          %v445 = vmul.f32 %v309, %v444
          %v446 = vstv %s230
          %v447 = vmul.f32 %v312, %v446
          %v448 = vadd.f32 %v445, %v447
          %v449 = vstv %s231
          %v450 = vmul.f32 %v315, %v449
          %v451 = vadd.f32 %v448, %v450
          %v452 = vstv %s232
          %v453 = vmul.f32 %v318, %v452
          %v454 = vadd.f32 %v451, %v453
          %v455 = vstv %s274
          %v456 = vadd.f32 %v454, %v455
          %v457 = vmul.f32 %v321, %v444
          %v458 = vmul.f32 %v324, %v446
          %v459 = vadd.f32 %v457, %v458
          %v460 = vmul.f32 %v327, %v449
          %v461 = vadd.f32 %v459, %v460
          %v462 = vmul.f32 %v330, %v452
          %v463 = vadd.f32 %v461, %v462
          %v464 = vadd.f32 %v463, %v455
          %v465 = vstv %s245
          %v466 = vmul.f32 %v309, %v465
          %v467 = vstv %s246
          %v468 = vmul.f32 %v312, %v467
          %v469 = vadd.f32 %v466, %v468
          %v470 = vstv %s247
          %v471 = vmul.f32 %v315, %v470
          %v472 = vadd.f32 %v469, %v471
          %v473 = vstv %s248
          %v474 = vmul.f32 %v318, %v473
          %v475 = vadd.f32 %v472, %v474
          %v476 = vstv %s278
          %v477 = vadd.f32 %v475, %v476
          %v478 = vmul.f32 %v321, %v465
          %v479 = vmul.f32 %v324, %v467
          %v480 = vadd.f32 %v478, %v479
          %v481 = vmul.f32 %v327, %v470
          %v482 = vadd.f32 %v480, %v481
          %v483 = vmul.f32 %v330, %v473
          %v484 = vadd.f32 %v482, %v483
          %v485 = vadd.f32 %v484, %v476
          %v486 = vstv %s261
          %v487 = vmul.f32 %v309, %v486
          %v488 = vstv %s262
          %v489 = vmul.f32 %v312, %v488
          %v490 = vadd.f32 %v487, %v489
          %v491 = vstv %s263
          %v492 = vmul.f32 %v315, %v491
          %v493 = vadd.f32 %v490, %v492
          %v494 = vstv %s264
          %v495 = vmul.f32 %v318, %v494
          %v496 = vadd.f32 %v493, %v495
          %v497 = vstv %s282
          %v498 = vadd.f32 %v496, %v497
          %v499 = vmul.f32 %v321, %v486
          %v500 = vmul.f32 %v324, %v488
          %v501 = vadd.f32 %v499, %v500
          %v502 = vmul.f32 %v327, %v491
          %v503 = vadd.f32 %v501, %v502
          %v504 = vmul.f32 %v330, %v494
          %v505 = vadd.f32 %v503, %v504
          %v506 = vadd.f32 %v505, %v497
          %v507 = vmul.f32 %v456, %v477
          %v508 = vmul.f32 %v456, %v485
          %v509 = vmax.f32 %v507, %v508
          %v510 = vsub.f32 %v507, %v509
          %v511 = vmul.f32 %v510, 1.442695
          %v512 = vpow.pop %v511
          %v513 = vsub.f32 %v508, %v509
          %v514 = vmul.f32 %v513, 1.442695
          %v515 = vpow.pop %v514
          %v516 = vadd.f32 %v512, %v515
          %v517 = vrcp.pop %v516
          %v518 = vmul.f32 %v516, %v517
          %v519 = vsub.f32 2.0, %v518
          %v520 = vmul.f32 %v517, %v519
          %v521 = vmul.f32 %v512, %v520
          %v522 = vmul.f32 %v515, %v520
          %v523 = vmul.f32 %v521, %v498
          %v524 = vmul.f32 %v522, %v506
          %v525 = vadd.f32 %v523, %v524
          %v526 = vstv %s286
          %v527 = vmul.f32 %v525, %v526
          %v528 = vadd.f32 %v414, %v527
          %v529 = vstv %s290
          %v530 = vmul.f32 %v525, %v529
          %v531 = vadd.f32 %v416, %v530
          %v532 = vstv %s294
          %v533 = vmul.f32 %v525, %v532
          %v534 = vadd.f32 %v418, %v533
          %v535 = vstv %s298
          %v536 = vmul.f32 %v525, %v535
          %v537 = vadd.f32 %v420, %v536
          %v538 = vmul.f32 %v464, %v477
          %v539 = vmul.f32 %v464, %v485
          %v540 = vmax.f32 %v538, %v539
          %v541 = vsub.f32 %v538, %v540
          %v542 = vmul.f32 %v541, 1.442695
          %v543 = vpow.pop %v542
          %v544 = vsub.f32 %v539, %v540
          %v545 = vmul.f32 %v544, 1.442695
          %v546 = vpow.pop %v545
          %v547 = vadd.f32 %v543, %v546
          %v548 = vrcp.pop %v547
          %v549 = vmul.f32 %v547, %v548
          %v550 = vsub.f32 2.0, %v549
          %v551 = vmul.f32 %v548, %v550
          %v552 = vmul.f32 %v543, %v551
          %v553 = vmul.f32 %v546, %v551
          %v554 = vmul.f32 %v552, %v498
          %v555 = vmul.f32 %v553, %v506
          %v556 = vadd.f32 %v554, %v555
          %v557 = vmul.f32 %v556, %v526
          %v558 = vadd.f32 %v440, %v557
          %v559 = vmul.f32 %v556, %v529
          %v560 = vadd.f32 %v441, %v559
          %v561 = vmul.f32 %v556, %v532
          %v562 = vadd.f32 %v442, %v561
          %v563 = vmul.f32 %v556, %v535
          %v564 = vadd.f32 %v443, %v563
          %v565 = vstv %s233
          %v566 = vmul.f32 %v309, %v565
          %v567 = vstv %s234
          %v568 = vmul.f32 %v312, %v567
          %v569 = vadd.f32 %v566, %v568
          %v570 = vstv %s235
          %v571 = vmul.f32 %v315, %v570
          %v572 = vadd.f32 %v569, %v571
          %v573 = vstv %s236
          %v574 = vmul.f32 %v318, %v573
          %v575 = vadd.f32 %v572, %v574
          %v576 = vstv %s275
          %v577 = vadd.f32 %v575, %v576
          %v578 = vmul.f32 %v321, %v565
          %v579 = vmul.f32 %v324, %v567
          %v580 = vadd.f32 %v578, %v579
          %v581 = vmul.f32 %v327, %v570
          %v582 = vadd.f32 %v580, %v581
          %v583 = vmul.f32 %v330, %v573
          %v584 = vadd.f32 %v582, %v583
          %v585 = vadd.f32 %v584, %v576
          %v586 = vstv %s249
          %v587 = vmul.f32 %v309, %v586
          %v588 = vstv %s250
          %v589 = vmul.f32 %v312, %v588
          %v590 = vadd.f32 %v587, %v589
          %v591 = vstv %s251
          %v592 = vmul.f32 %v315, %v591
          %v593 = vadd.f32 %v590, %v592
          %v594 = vstv %s252
          %v595 = vmul.f32 %v318, %v594
          %v596 = vadd.f32 %v593, %v595
          %v597 = vstv %s279
          %v598 = vadd.f32 %v596, %v597
          %v599 = vmul.f32 %v321, %v586
          %v600 = vmul.f32 %v324, %v588
          %v601 = vadd.f32 %v599, %v600
          %v602 = vmul.f32 %v327, %v591
          %v603 = vadd.f32 %v601, %v602
          %v604 = vmul.f32 %v330, %v594
          %v605 = vadd.f32 %v603, %v604
          %v606 = vadd.f32 %v605, %v597
          %v607 = vstv %s265
          %v608 = vmul.f32 %v309, %v607
          %v609 = vstv %s266
          %v610 = vmul.f32 %v312, %v609
          %v611 = vadd.f32 %v608, %v610
          %v612 = vstv %s267
          %v613 = vmul.f32 %v315, %v612
          %v614 = vadd.f32 %v611, %v613
          %v615 = vstv %s268
          %v616 = vmul.f32 %v318, %v615
          %v617 = vadd.f32 %v614, %v616
          %v618 = vstv %s283
          %v619 = vadd.f32 %v617, %v618
          %v620 = vmul.f32 %v321, %v607
          %v621 = vmul.f32 %v324, %v609
          %v622 = vadd.f32 %v620, %v621
          %v623 = vmul.f32 %v327, %v612
          %v624 = vadd.f32 %v622, %v623
          %v625 = vmul.f32 %v330, %v615
          %v626 = vadd.f32 %v624, %v625
          %v627 = vadd.f32 %v626, %v618
          %v628 = vmul.f32 %v577, %v598
          %v629 = vmul.f32 %v577, %v606
          %v630 = vmax.f32 %v628, %v629
          %v631 = vsub.f32 %v628, %v630
          %v632 = vmul.f32 %v631, 1.442695
          %v633 = vpow.pop %v632
          %v634 = vsub.f32 %v629, %v630
          %v635 = vmul.f32 %v634, 1.442695
          %v636 = vpow.pop %v635
          %v637 = vadd.f32 %v633, %v636
          %v638 = vrcp.pop %v637
          %v639 = vmul.f32 %v637, %v638
          %v640 = vsub.f32 2.0, %v639
          %v641 = vmul.f32 %v638, %v640
          %v642 = vmul.f32 %v633, %v641
          %v643 = vmul.f32 %v636, %v641
          %v644 = vmul.f32 %v642, %v619
          %v645 = vmul.f32 %v643, %v627
          %v646 = vadd.f32 %v644, %v645
          %v647 = vstv %s287
          %v648 = vmul.f32 %v646, %v647
          %v649 = vadd.f32 %v528, %v648
          %v650 = vstv %s291
          %v651 = vmul.f32 %v646, %v650
          %v652 = vadd.f32 %v531, %v651
          %v653 = vstv %s295
          %v654 = vmul.f32 %v646, %v653
          %v655 = vadd.f32 %v534, %v654
          %v656 = vstv %s299
          %v657 = vmul.f32 %v646, %v656
          %v658 = vadd.f32 %v537, %v657
          %v659 = vmul.f32 %v585, %v598
          %v660 = vmul.f32 %v585, %v606
          %v661 = vmax.f32 %v659, %v660
          %v662 = vsub.f32 %v659, %v661
          %v663 = vmul.f32 %v662, 1.442695
          %v664 = vpow.pop %v663
          %v665 = vsub.f32 %v660, %v661
          %v666 = vmul.f32 %v665, 1.442695
          %v667 = vpow.pop %v666
          %v668 = vadd.f32 %v664, %v667
          %v669 = vrcp.pop %v668
          %v670 = vmul.f32 %v668, %v669
          %v671 = vsub.f32 2.0, %v670
          %v672 = vmul.f32 %v669, %v671
          %v673 = vmul.f32 %v664, %v672
          %v674 = vmul.f32 %v667, %v672
          %v675 = vmul.f32 %v673, %v619
          %v676 = vmul.f32 %v674, %v627
          %v677 = vadd.f32 %v675, %v676
          %v678 = vmul.f32 %v677, %v647
          %v679 = vadd.f32 %v558, %v678
          %v680 = vmul.f32 %v677, %v650
          %v681 = vadd.f32 %v560, %v680
          %v682 = vmul.f32 %v677, %v653
          %v683 = vadd.f32 %v562, %v682
          %v684 = vmul.f32 %v677, %v656
          %v685 = vadd.f32 %v564, %v684
          %v686 = vstv %s237
          %v687 = vmul.f32 %v309, %v686
          %v688 = vstv %s238
          %v689 = vmul.f32 %v312, %v688
          %v690 = vadd.f32 %v687, %v689
          %v691 = vstv %s239
          %v692 = vmul.f32 %v315, %v691
          %v693 = vadd.f32 %v690, %v692
          %v694 = vstv %s240
          %v695 = vmul.f32 %v318, %v694
          %v696 = vadd.f32 %v693, %v695
          %v697 = vstv %s276
          %v698 = vadd.f32 %v696, %v697
          %v699 = vmul.f32 %v321, %v686
          %v700 = vmul.f32 %v324, %v688
          %v701 = vadd.f32 %v699, %v700
          %v702 = vmul.f32 %v327, %v691
          %v703 = vadd.f32 %v701, %v702
          %v704 = vmul.f32 %v330, %v694
          %v705 = vadd.f32 %v703, %v704
          %v706 = vadd.f32 %v705, %v697
          %v707 = vstv %s253
          %v708 = vmul.f32 %v309, %v707
          %v709 = vstv %s254
          %v710 = vmul.f32 %v312, %v709
          %v711 = vadd.f32 %v708, %v710
          %v712 = vstv %s255
          %v713 = vmul.f32 %v315, %v712
          %v714 = vadd.f32 %v711, %v713
          %v715 = vstv %s256
          %v716 = vmul.f32 %v318, %v715
          %v717 = vadd.f32 %v714, %v716
          %v718 = vstv %s280
          %v719 = vadd.f32 %v717, %v718
          %v720 = vmul.f32 %v321, %v707
          %v721 = vmul.f32 %v324, %v709
          %v722 = vadd.f32 %v720, %v721
          %v723 = vmul.f32 %v327, %v712
          %v724 = vadd.f32 %v722, %v723
          %v725 = vmul.f32 %v330, %v715
          %v726 = vadd.f32 %v724, %v725
          %v727 = vadd.f32 %v726, %v718
          %v728 = vstv %s269
          %v729 = vmul.f32 %v309, %v728
          %v730 = vstv %s270
          %v731 = vmul.f32 %v312, %v730
          %v732 = vadd.f32 %v729, %v731
          %v733 = vstv %s271
          %v734 = vmul.f32 %v315, %v733
          %v735 = vadd.f32 %v732, %v734
          %v736 = vstv %s272
          %v737 = vmul.f32 %v318, %v736
          %v738 = vadd.f32 %v735, %v737
          %v739 = vstv %s284
          %v740 = vadd.f32 %v738, %v739
          %v741 = vmul.f32 %v321, %v728
          %v742 = vmul.f32 %v324, %v730
          %v743 = vadd.f32 %v741, %v742
          %v744 = vmul.f32 %v327, %v733
          %v745 = vadd.f32 %v743, %v744
          %v746 = vmul.f32 %v330, %v736
          %v747 = vadd.f32 %v745, %v746
          %v748 = vadd.f32 %v747, %v739
          %v749 = vmul.f32 %v698, %v719
          %v750 = vmul.f32 %v698, %v727
          %v751 = vmax.f32 %v749, %v750
          %v752 = vsub.f32 %v749, %v751
          %v753 = vmul.f32 %v752, 1.442695
          %v754 = vpow.pop %v753
          %v755 = vsub.f32 %v750, %v751
          %v756 = vmul.f32 %v755, 1.442695
          %v757 = vpow.pop %v756
          %v758 = vadd.f32 %v754, %v757
          %v759 = vrcp.pop %v758
          %v760 = vmul.f32 %v758, %v759
          %v761 = vsub.f32 2.0, %v760
          %v762 = vmul.f32 %v759, %v761
          %v763 = vmul.f32 %v754, %v762
          %v764 = vmul.f32 %v757, %v762
          %v765 = vmul.f32 %v763, %v740
          %v766 = vmul.f32 %v764, %v748
          %v767 = vadd.f32 %v765, %v766
          %v768 = vstv %s288
          %v769 = vmul.f32 %v767, %v768
          %v770 = vadd.f32 %v649, %v769
          %v771 = vstv %s292
          %v772 = vmul.f32 %v767, %v771
          %v773 = vadd.f32 %v652, %v772
          %v774 = vstv %s296
          %v775 = vmul.f32 %v767, %v774
          %v776 = vadd.f32 %v655, %v775
          %v777 = vstv %s300
          %v778 = vmul.f32 %v767, %v777
          %v779 = vadd.f32 %v658, %v778
          %v780 = vmul.f32 %v706, %v719
          %v781 = vmul.f32 %v706, %v727
          %v782 = vmax.f32 %v780, %v781
          %v783 = vsub.f32 %v780, %v782
          %v784 = vmul.f32 %v783, 1.442695
          %v785 = vpow.pop %v784
          %v786 = vsub.f32 %v781, %v782
          %v787 = vmul.f32 %v786, 1.442695
          %v788 = vpow.pop %v787
          %v789 = vadd.f32 %v785, %v788
          %v790 = vrcp.pop %v789
          %v791 = vmul.f32 %v789, %v790
          %v792 = vsub.f32 2.0, %v791
          %v793 = vmul.f32 %v790, %v792
          %v794 = vmul.f32 %v785, %v793
          %v795 = vmul.f32 %v788, %v793
          %v796 = vmul.f32 %v794, %v740
          %v797 = vmul.f32 %v795, %v748
          %v798 = vadd.f32 %v796, %v797
          %v799 = vmul.f32 %v798, %v768
          %v800 = vadd.f32 %v679, %v799
          %v801 = vmul.f32 %v798, %v771
          %v802 = vadd.f32 %v681, %v801
          %v803 = vmul.f32 %v798, %v774
          %v804 = vadd.f32 %v683, %v803
          %v805 = vmul.f32 %v798, %v777
          %v806 = vadd.f32 %v685, %v805
          %v807 = vld [vmem:[#allocation7] sm:$0xff]
          %v808 = vadd.f32 %v807, %v770
          %809 = vst [vmem:[#allocation7] sm:$0xff] %v808
          %s810 = scalar_lea.vmem [#allocation7], 8
          %v811 = vld [vmem:[%s810] sm:$0xff]
          %v812 = vadd.f32 %v811, %v800
          %813 = vst [vmem:[%s810] sm:$0xff] %v812
          %s814 = scalar_lea.vmem [#allocation7], 16
          %v815 = vld [vmem:[%s814] sm:$0xff]
          %v816 = vadd.f32 %v815, %v773
          %817 = vst [vmem:[%s814] sm:$0xff] %v816
          %s818 = scalar_lea.vmem [#allocation7], 24
          %v819 = vld [vmem:[%s818] sm:$0xff]
          %v820 = vadd.f32 %v819, %v802
          %821 = vst [vmem:[%s818] sm:$0xff] %v820
          %s822 = scalar_lea.vmem [#allocation7], 32
          %v823 = vld [vmem:[%s822] sm:$0xff]
          %v824 = vadd.f32 %v823, %v776
          %825 = vst [vmem:[%s822] sm:$0xff] %v824
          %s826 = scalar_lea.vmem [#allocation7], 40
          %v827 = vld [vmem:[%s826] sm:$0xff]
          %v828 = vadd.f32 %v827, %v804
          %829 = vst [vmem:[%s826] sm:$0xff] %v828
          %s830 = scalar_lea.vmem [#allocation7], 48
          %v831 = vld [vmem:[%s830] sm:$0xff]
          %v832 = vadd.f32 %v831, %v779
          %833 = vst [vmem:[%s830] sm:$0xff] %v832
          %s834 = scalar_lea.vmem [#allocation7], 56
          %v835 = vld [vmem:[%s834] sm:$0xff]
          %v836 = vadd.f32 %v835, %v806
          %837 = vst [vmem:[%s834] sm:$0xff] %v836
        $region45: #{tpu_custom_call.1} parent=27 // loop_footer
          %s306 = sadd.s32 1, %s302
        $region46: #{tpu_custom_call.1} parent=27 // loop_footer_branch
          %301 = sbr.rel target = $region42
        $region47: #{tpu_custom_call.1} parent=27 // loop_exit
          _
        // Predicated region
        $region48: #{tpu_custom_call.1} parent=27 // pred_check
          %p838 = pneg %p99
        $region49: #{tpu_custom_call.1} parent=27 // pred_check_branch
          %840 = sbr.rel (%p838) target = $region51
        $region50: #{tpu_custom_call.1} parent=27 // pred_region
          %s842 = ssub.s32 1024, 1024
          %843 = vsyncadd [#allocation4], %s842
          %s844 = smul.addr %s22, 8
          %s845 = smul.addr %s844, 128
          %s846 = scalar_lea.hbm %s2, %s845
          %s847 = sshll.u32 [#allocation7], 4
          %s848 = int_to_ptr.vmem [resolvable:$true] %s847
          %853 = dma.vmem_to_hbm [thread:$0]  %s848, 1024, %s846, [#allocation4], 128, 128, 8
        $region51: #{tpu_custom_call.1} parent=27 // pred_fallthru
          _
        // Predicated region
        $region52: #{tpu_custom_call.1} parent=27 // pred_check
          %p854 = pneg %p99
        $region53: #{tpu_custom_call.1} parent=27 // pred_check_branch
          %856 = sbr.rel (%p854) target = $region55
        $region54: #{tpu_custom_call.1} parent=27 // pred_region
          %857 = dma.done [#allocation4], 1024
        $region55: #{tpu_custom_call.1} parent=27 // pred_fallthru
          _
      $region28: #{tpu_custom_call.1} parent=5 // pred_fallthru
        _
      %p858 = scmp.le.s32.totalorder 2, %s13
      // Predicated region
      $region56: #{tpu_custom_call.1} parent=5 // pred_check
        %p859 = pneg %p858
      $region57: #{tpu_custom_call.1} parent=5 // pred_check_branch
        %861 = sbr.rel (%p859) target = $region59
      $region58: #{tpu_custom_call.1} parent=5 // pred_region
        %s862 = ssub.s32 %s13, 2
      $region59: #{tpu_custom_call.1} parent=5 // pred_fallthru
        _
    $region6: #{tpu_custom_call.1} parent=1 // loop_footer
      %s17 = sadd.s32 1, %s13
    $region7: #{tpu_custom_call.1} parent=1 // loop_footer_branch
      %12 = sbr.rel target = $region3
    $region8: #{tpu_custom_call.1} parent=1 // loop_exit
      _
    %863 = vsyncpa [#allocation3], 1
    %s864 = scalar_lea.sflag [#allocation3], 1
    %865 = vsyncpa %s864, 1
    %866 = vsyncpa [#allocation4], 1
    %s867 = scalar_lea.sflag [#allocation4], 1
    %868 = vsyncpa %s867, 1
    %869 = vsyncpa [#allocation5], 1
    %s870 = scalar_lea.sflag [#allocation5], 1
    %871 = vsyncpa %s870, 1

</llo_original>
